<compile_context>
chip_gen: v5e
topology: v5e:2x2
jax: 0.10.0
libtpu: 0.0.40
codegen_flags: <defaults>
</compile_context>

<pallas_src>
import numpy as np
import jax
import jax.numpy as jnp
from jax import lax
from jax.experimental import pallas as pl
from jax.experimental.pallas import tpu as pltpu


def make_cnn_kernel(Ks, TB, L, D, V, Co, Hu, C):
    """One grid step processes TB batch rows end-to-end."""
    nK = len(Ks)
    Kmax = max(Ks)
    nKCo = nK * Co
    TBL = TB * L

    def kernel(tokens_ref,                       # SMEM (B, L) int32 (prefetch)
               emb_ref, convw_ref, w1t_ref, w2t_ref,
               cb_ref, b1_ref, b2_ref, lp_ref,   # VMEM weights / metadata
               out_ref,                          # VMEM (TB, C)
               emb_vmem):                        # VMEM scratch (TB*L+Kmax-1, D)
        b0 = pl.program_id(0) * TB

        # Zero the pad rows so windows running off the end read zeros (never
        # stale VMEM) — they are masked before pooling anyway, but stale
        # Inf/NaN * 0-weight could otherwise poison valid columns.
        if Kmax > 1:
            emb_vmem[pl.ds(TBL, Kmax - 1), :] = jnp.zeros((Kmax - 1, D),
                                                          jnp.float32)

        # ---- Embedding gather: scalar-addressed row loads (no one-hot) -----
        for b in range(TB):                      # unrolled, TB*L tiny here
            for t in range(L):
                tok = tokens_ref[b0 + b, t]
                tok = jnp.minimum(jnp.maximum(tok, 0), V - 1)   # clamp OOB ids
                emb_vmem[pl.ds(b * L + t, 1), :] = emb_ref[pl.ds(tok, 1), :]

        # ---- All convolutions at once: Kmax shift-matmuls ------------------
        # conv[b*L + p, i*Co + c] = sum_j sum_d emb[b, p+j, d] * W_i[c, j, d]
        # (weight slab is zero for j >= Ks[i] in block i).
        conv = jnp.zeros((TBL, nKCo), jnp.float32)
        for j in range(Kmax):
            emb_j = emb_vmem[pl.ds(j, TBL), :]                  # rows r + j
            Wj = convw_ref[j * D:(j + 1) * D, :]                # (D, nK*Co)
            conv = conv + jnp.dot(emb_j, Wj,
                                  preferred_element_type=jnp.float32)

        # Mask positions whose window runs past the sequence (per kernel size)
        pos = lax.broadcasted_iota(jnp.int32, (TBL, nKCo), 0) % L
        conv = jnp.where(pos < lp_ref[...], conv, -jnp.inf)

        # ---- Max-pool over sequence; bias + ReLU after pool (monotone) -----
        pooled = jnp.concatenate(
            [jnp.max(conv[b * L:(b + 1) * L, :], axis=0, keepdims=True)
             for b in range(TB)], axis=0)                       # (TB, nK*Co)
        pooled = jnp.maximum(pooled + cb_ref[...], 0.0)

        # ---- MLP head + sigmoid --------------------------------------------
        h = jnp.dot(pooled, w1t_ref[...],
                    preferred_element_type=jnp.float32) + b1_ref[...]
        h = jnp.maximum(h, 0.0)
        logits = jnp.dot(h, w2t_ref[...],
                         preferred_element_type=jnp.float32) + b2_ref[...]
        out_ref[...] = jax.nn.sigmoid(logits)                   # (TB, C)

    return kernel


def cnn_forward(tokens, emb_table, conv_params, lin1, lin2, *, Ks, Co, Hu, C):
    B, L = tokens.shape
    V, D = emb_table.shape
    nK = len(Ks)
    Kmax = max(Ks)
    nKCo = nK * Co
    assert all(k <= L for k in Ks)

    # ---- Host-side layout plumbing (free) ----------------------------------
    # One lane-packed, zero-padded conv weight slab:
    #   slab[j*D + d, i*Co + c] = W_i[c, j, d]   (zero for j >= Ks[i])
    slab = np.zeros((Kmax * D, nKCo), np.float32)
    for i, ((W, _), k) in enumerate(zip(conv_params, Ks)):
        Wt = np.transpose(np.asarray(W, np.float32), (1, 2, 0))  # (k, D, Co)
        slab[:k * D, i * Co:(i + 1) * Co] = Wt.reshape(k * D, Co)
    conv_w = jnp.asarray(slab)

    conv_b = jnp.concatenate(
        [jnp.asarray(b, jnp.float32) for (_, b) in conv_params]
    ).reshape(1, nKCo)
    # Per-column valid-length threshold (Lp = L - k + 1 for each filter).
    lp = jnp.asarray(
        np.concatenate([np.full((Co,), L - k + 1, np.int32) for k in Ks])
    ).reshape(1, nKCo)

    wl1, bl1 = lin1
    wl2, bl2 = lin2
    w1t = jnp.asarray(wl1, jnp.float32).T                        # (nK*Co, Hu)
    w2t = jnp.asarray(wl2, jnp.float32).T                        # (Hu, C)
    b1 = jnp.asarray(bl1, jnp.float32).reshape(1, Hu)
    b2 = jnp.asarray(bl2, jnp.float32).reshape(1, C)

    # Batch tiling: full batch per step for small B, 8-row tiles otherwise
    # (keeps out-block shapes tile-friendly and feeds both v7x TensorCores).
    TB = B if B <= 8 else 8
    assert B % TB == 0
    grid = (B // TB,)

    kernel = make_cnn_kernel(Ks, TB, L, D, V, Co, Hu, C)

    return pl.pallas_call(
        kernel,
        out_shape=jax.ShapeDtypeStruct((B, C), jnp.float32),
        grid_spec=pltpu.PrefetchScalarGridSpec(
            num_scalar_prefetch=1,                 # tokens -> SMEM
            grid=grid,
            in_specs=[
                pl.BlockSpec((V, D), lambda i, tok: (0, 0)),        # emb table
                pl.BlockSpec((Kmax * D, nKCo), lambda i, tok: (0, 0)),
                pl.BlockSpec((nKCo, Hu), lambda i, tok: (0, 0)),
                pl.BlockSpec((Hu, C), lambda i, tok: (0, 0)),
                pl.BlockSpec((1, nKCo), lambda i, tok: (0, 0)),     # conv bias
                pl.BlockSpec((1, Hu), lambda i, tok: (0, 0)),       # b1
                pl.BlockSpec((1, C), lambda i, tok: (0, 0)),        # b2
                pl.BlockSpec((1, nKCo), lambda i, tok: (0, 0)),     # Lp per col
            ],
            out_specs=pl.BlockSpec((TB, C), lambda i, tok: (i, 0)),
            scratch_shapes=[pltpu.VMEM((TB * L + Kmax - 1, D), jnp.float32)],
        ),
        compiler_params=pltpu.CompilerParams(
            dimension_semantics=("parallel",),
            vmem_limit_bytes=32 * 1024 * 1024,
        ),
    )(tokens.astype(jnp.int32), jnp.asarray(emb_table, jnp.float32), conv_w,
      w1t, w2t, conv_b, b1, b2, lp)


def cnn_reference(tokens, emb_table, conv_params, lin1, lin2, Ks):
    """Pure-JAX reference mirroring the torch forward (sanity check)."""
    emb = emb_table[tokens].astype(jnp.float32)                  # (B, L, D)
    B, L, D = emb.shape
    pooled = []
    for (W, b), k in zip(conv_params, Ks):
        Lp = L - k + 1
        cols = [jnp.einsum('bjd,cjd->bc', emb[:, p:p + k, :], W)
                for p in range(Lp)]
        conv = jnp.stack(cols, axis=2) + b[None, :, None]        # (B, Co, Lp)
        conv = jnp.maximum(conv, 0.0)
        pooled.append(conv.max(axis=2))
    feat = jnp.concatenate(pooled, axis=1)
    h = jnp.maximum(feat @ lin1[0].T + lin1[1], 0.0)
    return jax.nn.sigmoid(h @ lin2[0].T + lin2[1])


if __name__ == "__main__":
    # Small shapes consistent with the module.
    vocab_size = 50
    emb_dim = 32          # D
    Co = 8                # filters per kernel size
    Hu = [32]             # hidden units (torch uses Hu[0] / Hu[-1])
    C = 4                 # classes
    Ks = [3, 4, 5]        # kernel sizes
    B, L = 2, 16          # batch, sequence length

    key = jax.random.PRNGKey(0)
    keys = jax.random.split(key, 2 + 2 * len(Ks) + 4)

    # Frozen pretrained embedding table (deterministic synthetic weights).
    emb_table = jax.random.normal(keys[0], (vocab_size, emb_dim), jnp.float32) * 0.1
    tokens = jax.random.randint(keys[1], (B, L), 0, vocab_size, jnp.int32)

    conv_params = []
    for i, k in enumerate(Ks):
        W = jax.random.normal(keys[2 + 2 * i], (Co, k, emb_dim), jnp.float32) * 0.1
        b = jax.random.normal(keys[3 + 2 * i], (Co,), jnp.float32) * 0.1
        conv_params.append((W, b))

    off = 2 + 2 * len(Ks)
    wl1 = jax.random.normal(keys[off + 0], (Hu[0], Co * len(Ks)), jnp.float32) * 0.1
    bl1 = jax.random.normal(keys[off + 1], (Hu[0],), jnp.float32) * 0.1
    wl2 = jax.random.normal(keys[off + 2], (C, Hu[-1]), jnp.float32) * 0.1
    bl2 = jax.random.normal(keys[off + 3], (C,), jnp.float32) * 0.1

    out = cnn_forward(tokens, emb_table, conv_params, (wl1, bl1), (wl2, bl2),
                      Ks=Ks, Co=Co, Hu=Hu[0], C=C)
    out = jax.block_until_ready(out)

    ref = cnn_reference(tokens, emb_table, conv_params, (wl1, bl1), (wl2, bl2), Ks)
    assert out.shape == (B, C)
    assert np.allclose(np.asarray(out), np.asarray(ref), atol=1e-4, rtol=1e-4)

    print("KERNEL_OK")
</pallas_src>

<mosaic_0001>
module attributes {stable_mosaic.version = 11 : i64} {
  func.func @kernel(%arg0: i32, %arg1: memref<2x16xi32, #tpu.memory_space<smem>>, %arg2: memref<50x32xf32, #tpu.memory_space<vmem>>, %arg3: memref<160x24xf32, #tpu.memory_space<vmem>>, %arg4: memref<24x32xf32, #tpu.memory_space<vmem>>, %arg5: memref<32x4xf32, #tpu.memory_space<vmem>>, %arg6: memref<1x24xf32, #tpu.memory_space<vmem>>, %arg7: memref<1x32xf32, #tpu.memory_space<vmem>>, %arg8: memref<1x4xf32, #tpu.memory_space<vmem>>, %arg9: memref<1x24xi32, #tpu.memory_space<vmem>>, %arg10: memref<2x4xf32, #tpu.memory_space<vmem>>, %arg11: memref<36x32xf32, #tpu.memory_space<vmem>>) attributes {dimension_semantics = [#tpu.dimension_semantics<parallel>], iteration_bounds = array<i64: 1>, scalar_prefetch = 1 : i64, scratch_operands = 1 : i64, tpu.core_type = #tpu.core_type<tc>, window_params = [{pipeline_mode = #tpu.pipeline_mode<synchronous>, transform_indices = @transform_0, window_bounds = array<i64: 50, 32>}, {pipeline_mode = #tpu.pipeline_mode<synchronous>, transform_indices = @transform_1, window_bounds = array<i64: 160, 24>}, {pipeline_mode = #tpu.pipeline_mode<synchronous>, transform_indices = @transform_2, window_bounds = array<i64: 24, 32>}, {pipeline_mode = #tpu.pipeline_mode<synchronous>, transform_indices = @transform_3, window_bounds = array<i64: 32, 4>}, {pipeline_mode = #tpu.pipeline_mode<synchronous>, transform_indices = @transform_4, window_bounds = array<i64: 1, 24>}, {pipeline_mode = #tpu.pipeline_mode<synchronous>, transform_indices = @transform_5, window_bounds = array<i64: 1, 32>}, {pipeline_mode = #tpu.pipeline_mode<synchronous>, transform_indices = @transform_6, window_bounds = array<i64: 1, 4>}, {pipeline_mode = #tpu.pipeline_mode<synchronous>, transform_indices = @transform_7, window_bounds = array<i64: 1, 24>}, {transform_indices = @transform_8, window_bounds = array<i64: 2, 4>}]} {
    %c2_i32 = arith.constant 2 : i32
    %0 = arith.muli %arg0, %c2_i32 : i32
    %cst = arith.constant 0.000000e+00 : f32
    %1 = vector.broadcast %cst : f32 to vector<4x32xf32>
    %c32 = arith.constant 32 : index
    %c0 = arith.constant 0 : index
    %2 = vector.load %arg11[%c32, %c0] : memref<36x32xf32, #tpu.memory_space<vmem>>, vector<4x32xf32>
    tpu.vector_store %arg11[%c32, %c0], %1 {strides = array<i32>} : memref<36x32xf32, #tpu.memory_space<vmem>>, vector<4x32xf32>,
    %c0_i32 = arith.constant 0 : i32
    %3 = arith.addi %0, %c0_i32 : i32
    %4 = arith.index_cast %3 : i32 to index
    %c0_0 = arith.constant 0 : index
    %5 = memref.load %arg1[%4, %c0_0] : memref<2x16xi32, #tpu.memory_space<smem>>
    %c0_i32_1 = arith.constant 0 : i32
    %6 = arith.maxsi %5, %c0_i32_1 : i32
    %c49_i32 = arith.constant 49 : i32
    %7 = arith.minsi %6, %c49_i32 : i32
    %8 = arith.index_cast %7 : i32 to index
    %c0_2 = arith.constant 0 : index
    %9 = vector.load %arg2[%8, %c0_2] : memref<50x32xf32, #tpu.memory_space<vmem>>, vector<1x32xf32>
    %c0_3 = arith.constant 0 : index
    %c0_4 = arith.constant 0 : index
    %10 = vector.load %arg11[%c0_3, %c0_4] : memref<36x32xf32, #tpu.memory_space<vmem>>, vector<1x32xf32>
    tpu.vector_store %arg11[%c0_3, %c0_4], %9 {strides = array<i32>} : memref<36x32xf32, #tpu.memory_space<vmem>>, vector<1x32xf32>,
    %c0_i32_5 = arith.constant 0 : i32
    %11 = arith.addi %0, %c0_i32_5 : i32
    %12 = arith.index_cast %11 : i32 to index
    %c1 = arith.constant 1 : index
    %13 = memref.load %arg1[%12, %c1] : memref<2x16xi32, #tpu.memory_space<smem>>
    %c0_i32_6 = arith.constant 0 : i32
    %14 = arith.maxsi %13, %c0_i32_6 : i32
    %c49_i32_7 = arith.constant 49 : i32
    %15 = arith.minsi %14, %c49_i32_7 : i32
    %16 = arith.index_cast %15 : i32 to index
    %c0_8 = arith.constant 0 : index
    %17 = vector.load %arg2[%16, %c0_8] : memref<50x32xf32, #tpu.memory_space<vmem>>, vector<1x32xf32>
    %c1_9 = arith.constant 1 : index
    %c0_10 = arith.constant 0 : index
    %18 = vector.load %arg11[%c1_9, %c0_10] : memref<36x32xf32, #tpu.memory_space<vmem>>, vector<1x32xf32>
    tpu.vector_store %arg11[%c1_9, %c0_10], %17 {strides = array<i32>} : memref<36x32xf32, #tpu.memory_space<vmem>>, vector<1x32xf32>,
    %c0_i32_11 = arith.constant 0 : i32
    %19 = arith.addi %0, %c0_i32_11 : i32
    %20 = arith.index_cast %19 : i32 to index
    %c2 = arith.constant 2 : index
    %21 = memref.load %arg1[%20, %c2] : memref<2x16xi32, #tpu.memory_space<smem>>
    %c0_i32_12 = arith.constant 0 : i32
    %22 = arith.maxsi %21, %c0_i32_12 : i32
    %c49_i32_13 = arith.constant 49 : i32
    %23 = arith.minsi %22, %c49_i32_13 : i32
    %24 = arith.index_cast %23 : i32 to index
    %c0_14 = arith.constant 0 : index
    %25 = vector.load %arg2[%24, %c0_14] : memref<50x32xf32, #tpu.memory_space<vmem>>, vector<1x32xf32>
    %c2_15 = arith.constant 2 : index
    %c0_16 = arith.constant 0 : index
    %26 = vector.load %arg11[%c2_15, %c0_16] : memref<36x32xf32, #tpu.memory_space<vmem>>, vector<1x32xf32>
    tpu.vector_store %arg11[%c2_15, %c0_16], %25 {strides = array<i32>} : memref<36x32xf32, #tpu.memory_space<vmem>>, vector<1x32xf32>,
    %c0_i32_17 = arith.constant 0 : i32
    %27 = arith.addi %0, %c0_i32_17 : i32
    %28 = arith.index_cast %27 : i32 to index
    %c3 = arith.constant 3 : index
    %29 = memref.load %arg1[%28, %c3] : memref<2x16xi32, #tpu.memory_space<smem>>
    %c0_i32_18 = arith.constant 0 : i32
    %30 = arith.maxsi %29, %c0_i32_18 : i32
    %c49_i32_19 = arith.constant 49 : i32
    %31 = arith.minsi %30, %c49_i32_19 : i32
    %32 = arith.index_cast %31 : i32 to index
    %c0_20 = arith.constant 0 : index
    %33 = vector.load %arg2[%32, %c0_20] : memref<50x32xf32, #tpu.memory_space<vmem>>, vector<1x32xf32>
    %c3_21 = arith.constant 3 : index
    %c0_22 = arith.constant 0 : index
    %34 = vector.load %arg11[%c3_21, %c0_22] : memref<36x32xf32, #tpu.memory_space<vmem>>, vector<1x32xf32>
    tpu.vector_store %arg11[%c3_21, %c0_22], %33 {strides = array<i32>} : memref<36x32xf32, #tpu.memory_space<vmem>>, vector<1x32xf32>,
    %c0_i32_23 = arith.constant 0 : i32
    %35 = arith.addi %0, %c0_i32_23 : i32
    %36 = arith.index_cast %35 : i32 to index
    %c4 = arith.constant 4 : index
    %37 = memref.load %arg1[%36, %c4] : memref<2x16xi32, #tpu.memory_space<smem>>
    %c0_i32_24 = arith.constant 0 : i32
    %38 = arith.maxsi %37, %c0_i32_24 : i32
    %c49_i32_25 = arith.constant 49 : i32
    %39 = arith.minsi %38, %c49_i32_25 : i32
    %40 = arith.index_cast %39 : i32 to index
    %c0_26 = arith.constant 0 : index
    %41 = vector.load %arg2[%40, %c0_26] : memref<50x32xf32, #tpu.memory_space<vmem>>, vector<1x32xf32>
    %c4_27 = arith.constant 4 : index
    %c0_28 = arith.constant 0 : index
    %42 = vector.load %arg11[%c4_27, %c0_28] : memref<36x32xf32, #tpu.memory_space<vmem>>, vector<1x32xf32>
    tpu.vector_store %arg11[%c4_27, %c0_28], %41 {strides = array<i32>} : memref<36x32xf32, #tpu.memory_space<vmem>>, vector<1x32xf32>,
    %c0_i32_29 = arith.constant 0 : i32
    %43 = arith.addi %0, %c0_i32_29 : i32
    %44 = arith.index_cast %43 : i32 to index
    %c5 = arith.constant 5 : index
    %45 = memref.load %arg1[%44, %c5] : memref<2x16xi32, #tpu.memory_space<smem>>
    %c0_i32_30 = arith.constant 0 : i32
    %46 = arith.maxsi %45, %c0_i32_30 : i32
    %c49_i32_31 = arith.constant 49 : i32
    %47 = arith.minsi %46, %c49_i32_31 : i32
    %48 = arith.index_cast %47 : i32 to index
    %c0_32 = arith.constant 0 : index
    %49 = vector.load %arg2[%48, %c0_32] : memref<50x32xf32, #tpu.memory_space<vmem>>, vector<1x32xf32>
    %c5_33 = arith.constant 5 : index
    %c0_34 = arith.constant 0 : index
    %50 = vector.load %arg11[%c5_33, %c0_34] : memref<36x32xf32, #tpu.memory_space<vmem>>, vector<1x32xf32>
    tpu.vector_store %arg11[%c5_33, %c0_34], %49 {strides = array<i32>} : memref<36x32xf32, #tpu.memory_space<vmem>>, vector<1x32xf32>,
    %c0_i32_35 = arith.constant 0 : i32
    %51 = arith.addi %0, %c0_i32_35 : i32
    %52 = arith.index_cast %51 : i32 to index
    %c6 = arith.constant 6 : index
    %53 = memref.load %arg1[%52, %c6] : memref<2x16xi32, #tpu.memory_space<smem>>
    %c0_i32_36 = arith.constant 0 : i32
    %54 = arith.maxsi %53, %c0_i32_36 : i32
    %c49_i32_37 = arith.constant 49 : i32
    %55 = arith.minsi %54, %c49_i32_37 : i32
    %56 = arith.index_cast %55 : i32 to index
    %c0_38 = arith.constant 0 : index
    %57 = vector.load %arg2[%56, %c0_38] : memref<50x32xf32, #tpu.memory_space<vmem>>, vector<1x32xf32>
    %c6_39 = arith.constant 6 : index
    %c0_40 = arith.constant 0 : index
    %58 = vector.load %arg11[%c6_39, %c0_40] : memref<36x32xf32, #tpu.memory_space<vmem>>, vector<1x32xf32>
    tpu.vector_store %arg11[%c6_39, %c0_40], %57 {strides = array<i32>} : memref<36x32xf32, #tpu.memory_space<vmem>>, vector<1x32xf32>,
    %c0_i32_41 = arith.constant 0 : i32
    %59 = arith.addi %0, %c0_i32_41 : i32
    %60 = arith.index_cast %59 : i32 to index
    %c7 = arith.constant 7 : index
    %61 = memref.load %arg1[%60, %c7] : memref<2x16xi32, #tpu.memory_space<smem>>
    %c0_i32_42 = arith.constant 0 : i32
    %62 = arith.maxsi %61, %c0_i32_42 : i32
    %c49_i32_43 = arith.constant 49 : i32
    %63 = arith.minsi %62, %c49_i32_43 : i32
    %64 = arith.index_cast %63 : i32 to index
    %c0_44 = arith.constant 0 : index
    %65 = vector.load %arg2[%64, %c0_44] : memref<50x32xf32, #tpu.memory_space<vmem>>, vector<1x32xf32>
    %c7_45 = arith.constant 7 : index
    %c0_46 = arith.constant 0 : index
    %66 = vector.load %arg11[%c7_45, %c0_46] : memref<36x32xf32, #tpu.memory_space<vmem>>, vector<1x32xf32>
    tpu.vector_store %arg11[%c7_45, %c0_46], %65 {strides = array<i32>} : memref<36x32xf32, #tpu.memory_space<vmem>>, vector<1x32xf32>,
    %c0_i32_47 = arith.constant 0 : i32
    %67 = arith.addi %0, %c0_i32_47 : i32
    %68 = arith.index_cast %67 : i32 to index
    %c8 = arith.constant 8 : index
    %69 = memref.load %arg1[%68, %c8] : memref<2x16xi32, #tpu.memory_space<smem>>
    %c0_i32_48 = arith.constant 0 : i32
    %70 = arith.maxsi %69, %c0_i32_48 : i32
    %c49_i32_49 = arith.constant 49 : i32
    %71 = arith.minsi %70, %c49_i32_49 : i32
    %72 = arith.index_cast %71 : i32 to index
    %c0_50 = arith.constant 0 : index
    %73 = vector.load %arg2[%72, %c0_50] : memref<50x32xf32, #tpu.memory_space<vmem>>, vector<1x32xf32>
    %c8_51 = arith.constant 8 : index
    %c0_52 = arith.constant 0 : index
    %74 = vector.load %arg11[%c8_51, %c0_52] : memref<36x32xf32, #tpu.memory_space<vmem>>, vector<1x32xf32>
    tpu.vector_store %arg11[%c8_51, %c0_52], %73 {strides = array<i32>} : memref<36x32xf32, #tpu.memory_space<vmem>>, vector<1x32xf32>,
    %c0_i32_53 = arith.constant 0 : i32
    %75 = arith.addi %0, %c0_i32_53 : i32
    %76 = arith.index_cast %75 : i32 to index
    %c9 = arith.constant 9 : index
    %77 = memref.load %arg1[%76, %c9] : memref<2x16xi32, #tpu.memory_space<smem>>
    %c0_i32_54 = arith.constant 0 : i32
    %78 = arith.maxsi %77, %c0_i32_54 : i32
    %c49_i32_55 = arith.constant 49 : i32
    %79 = arith.minsi %78, %c49_i32_55 : i32
    %80 = arith.index_cast %79 : i32 to index
    %c0_56 = arith.constant 0 : index
    %81 = vector.load %arg2[%80, %c0_56] : memref<50x32xf32, #tpu.memory_space<vmem>>, vector<1x32xf32>
    %c9_57 = arith.constant 9 : index
    %c0_58 = arith.constant 0 : index
    %82 = vector.load %arg11[%c9_57, %c0_58] : memref<36x32xf32, #tpu.memory_space<vmem>>, vector<1x32xf32>
    tpu.vector_store %arg11[%c9_57, %c0_58], %81 {strides = array<i32>} : memref<36x32xf32, #tpu.memory_space<vmem>>, vector<1x32xf32>,
    %c0_i32_59 = arith.constant 0 : i32
    %83 = arith.addi %0, %c0_i32_59 : i32
    %84 = arith.index_cast %83 : i32 to index
    %c10 = arith.constant 10 : index
    %85 = memref.load %arg1[%84, %c10] : memref<2x16xi32, #tpu.memory_space<smem>>
    %c0_i32_60 = arith.constant 0 : i32
    %86 = arith.maxsi %85, %c0_i32_60 : i32
    %c49_i32_61 = arith.constant 49 : i32
    %87 = arith.minsi %86, %c49_i32_61 : i32
    %88 = arith.index_cast %87 : i32 to index
    %c0_62 = arith.constant 0 : index
    %89 = vector.load %arg2[%88, %c0_62] : memref<50x32xf32, #tpu.memory_space<vmem>>, vector<1x32xf32>
    %c10_63 = arith.constant 10 : index
    %c0_64 = arith.constant 0 : index
    %90 = vector.load %arg11[%c10_63, %c0_64] : memref<36x32xf32, #tpu.memory_space<vmem>>, vector<1x32xf32>
    tpu.vector_store %arg11[%c10_63, %c0_64], %89 {strides = array<i32>} : memref<36x32xf32, #tpu.memory_space<vmem>>, vector<1x32xf32>,
    %c0_i32_65 = arith.constant 0 : i32
    %91 = arith.addi %0, %c0_i32_65 : i32
    %92 = arith.index_cast %91 : i32 to index
    %c11 = arith.constant 11 : index
    %93 = memref.load %arg1[%92, %c11] : memref<2x16xi32, #tpu.memory_space<smem>>
    %c0_i32_66 = arith.constant 0 : i32
    %94 = arith.maxsi %93, %c0_i32_66 : i32
    %c49_i32_67 = arith.constant 49 : i32
    %95 = arith.minsi %94, %c49_i32_67 : i32
    %96 = arith.index_cast %95 : i32 to index
    %c0_68 = arith.constant 0 : index
    %97 = vector.load %arg2[%96, %c0_68] : memref<50x32xf32, #tpu.memory_space<vmem>>, vector<1x32xf32>
    %c11_69 = arith.constant 11 : index
    %c0_70 = arith.constant 0 : index
    %98 = vector.load %arg11[%c11_69, %c0_70] : memref<36x32xf32, #tpu.memory_space<vmem>>, vector<1x32xf32>
    tpu.vector_store %arg11[%c11_69, %c0_70], %97 {strides = array<i32>} : memref<36x32xf32, #tpu.memory_space<vmem>>, vector<1x32xf32>,
    %c0_i32_71 = arith.constant 0 : i32
    %99 = arith.addi %0, %c0_i32_71 : i32
    %100 = arith.index_cast %99 : i32 to index
    %c12 = arith.constant 12 : index
    %101 = memref.load %arg1[%100, %c12] : memref<2x16xi32, #tpu.memory_space<smem>>
    %c0_i32_72 = arith.constant 0 : i32
    %102 = arith.maxsi %101, %c0_i32_72 : i32
    %c49_i32_73 = arith.constant 49 : i32
    %103 = arith.minsi %102, %c49_i32_73 : i32
    %104 = arith.index_cast %103 : i32 to index
    %c0_74 = arith.constant 0 : index
    %105 = vector.load %arg2[%104, %c0_74] : memref<50x32xf32, #tpu.memory_space<vmem>>, vector<1x32xf32>
    %c12_75 = arith.constant 12 : index
    %c0_76 = arith.constant 0 : index
    %106 = vector.load %arg11[%c12_75, %c0_76] : memref<36x32xf32, #tpu.memory_space<vmem>>, vector<1x32xf32>
    tpu.vector_store %arg11[%c12_75, %c0_76], %105 {strides = array<i32>} : memref<36x32xf32, #tpu.memory_space<vmem>>, vector<1x32xf32>,
    %c0_i32_77 = arith.constant 0 : i32
    %107 = arith.addi %0, %c0_i32_77 : i32
    %108 = arith.index_cast %107 : i32 to index
    %c13 = arith.constant 13 : index
    %109 = memref.load %arg1[%108, %c13] : memref<2x16xi32, #tpu.memory_space<smem>>
    %c0_i32_78 = arith.constant 0 : i32
    %110 = arith.maxsi %109, %c0_i32_78 : i32
    %c49_i32_79 = arith.constant 49 : i32
    %111 = arith.minsi %110, %c49_i32_79 : i32
    %112 = arith.index_cast %111 : i32 to index
    %c0_80 = arith.constant 0 : index
    %113 = vector.load %arg2[%112, %c0_80] : memref<50x32xf32, #tpu.memory_space<vmem>>, vector<1x32xf32>
    %c13_81 = arith.constant 13 : index
    %c0_82 = arith.constant 0 : index
    %114 = vector.load %arg11[%c13_81, %c0_82] : memref<36x32xf32, #tpu.memory_space<vmem>>, vector<1x32xf32>
    tpu.vector_store %arg11[%c13_81, %c0_82], %113 {strides = array<i32>} : memref<36x32xf32, #tpu.memory_space<vmem>>, vector<1x32xf32>,
    %c0_i32_83 = arith.constant 0 : i32
    %115 = arith.addi %0, %c0_i32_83 : i32
    %116 = arith.index_cast %115 : i32 to index
    %c14 = arith.constant 14 : index
    %117 = memref.load %arg1[%116, %c14] : memref<2x16xi32, #tpu.memory_space<smem>>
    %c0_i32_84 = arith.constant 0 : i32
    %118 = arith.maxsi %117, %c0_i32_84 : i32
    %c49_i32_85 = arith.constant 49 : i32
    %119 = arith.minsi %118, %c49_i32_85 : i32
    %120 = arith.index_cast %119 : i32 to index
    %c0_86 = arith.constant 0 : index
    %121 = vector.load %arg2[%120, %c0_86] : memref<50x32xf32, #tpu.memory_space<vmem>>, vector<1x32xf32>
    %c14_87 = arith.constant 14 : index
    %c0_88 = arith.constant 0 : index
    %122 = vector.load %arg11[%c14_87, %c0_88] : memref<36x32xf32, #tpu.memory_space<vmem>>, vector<1x32xf32>
    tpu.vector_store %arg11[%c14_87, %c0_88], %121 {strides = array<i32>} : memref<36x32xf32, #tpu.memory_space<vmem>>, vector<1x32xf32>,
    %c0_i32_89 = arith.constant 0 : i32
    %123 = arith.addi %0, %c0_i32_89 : i32
    %124 = arith.index_cast %123 : i32 to index
    %c15 = arith.constant 15 : index
    %125 = memref.load %arg1[%124, %c15] : memref<2x16xi32, #tpu.memory_space<smem>>
    %c0_i32_90 = arith.constant 0 : i32
    %126 = arith.maxsi %125, %c0_i32_90 : i32
    %c49_i32_91 = arith.constant 49 : i32
    %127 = arith.minsi %126, %c49_i32_91 : i32
    %128 = arith.index_cast %127 : i32 to index
    %c0_92 = arith.constant 0 : index
    %129 = vector.load %arg2[%128, %c0_92] : memref<50x32xf32, #tpu.memory_space<vmem>>, vector<1x32xf32>
    %c15_93 = arith.constant 15 : index
    %c0_94 = arith.constant 0 : index
    %130 = vector.load %arg11[%c15_93, %c0_94] : memref<36x32xf32, #tpu.memory_space<vmem>>, vector<1x32xf32>
    tpu.vector_store %arg11[%c15_93, %c0_94], %129 {strides = array<i32>} : memref<36x32xf32, #tpu.memory_space<vmem>>, vector<1x32xf32>,
    %c1_i32 = arith.constant 1 : i32
    %131 = arith.addi %0, %c1_i32 : i32
    %132 = arith.index_cast %131 : i32 to index
    %c0_95 = arith.constant 0 : index
    %133 = memref.load %arg1[%132, %c0_95] : memref<2x16xi32, #tpu.memory_space<smem>>
    %c0_i32_96 = arith.constant 0 : i32
    %134 = arith.maxsi %133, %c0_i32_96 : i32
    %c49_i32_97 = arith.constant 49 : i32
    %135 = arith.minsi %134, %c49_i32_97 : i32
    %136 = arith.index_cast %135 : i32 to index
    %c0_98 = arith.constant 0 : index
    %137 = vector.load %arg2[%136, %c0_98] : memref<50x32xf32, #tpu.memory_space<vmem>>, vector<1x32xf32>
    %c16 = arith.constant 16 : index
    %c0_99 = arith.constant 0 : index
    %138 = vector.load %arg11[%c16, %c0_99] : memref<36x32xf32, #tpu.memory_space<vmem>>, vector<1x32xf32>
    tpu.vector_store %arg11[%c16, %c0_99], %137 {strides = array<i32>} : memref<36x32xf32, #tpu.memory_space<vmem>>, vector<1x32xf32>,
    %c1_i32_100 = arith.constant 1 : i32
    %139 = arith.addi %0, %c1_i32_100 : i32
    %140 = arith.index_cast %139 : i32 to index
    %c1_101 = arith.constant 1 : index
    %141 = memref.load %arg1[%140, %c1_101] : memref<2x16xi32, #tpu.memory_space<smem>>
    %c0_i32_102 = arith.constant 0 : i32
    %142 = arith.maxsi %141, %c0_i32_102 : i32
    %c49_i32_103 = arith.constant 49 : i32
    %143 = arith.minsi %142, %c49_i32_103 : i32
    %144 = arith.index_cast %143 : i32 to index
    %c0_104 = arith.constant 0 : index
    %145 = vector.load %arg2[%144, %c0_104] : memref<50x32xf32, #tpu.memory_space<vmem>>, vector<1x32xf32>
    %c17 = arith.constant 17 : index
    %c0_105 = arith.constant 0 : index
    %146 = vector.load %arg11[%c17, %c0_105] : memref<36x32xf32, #tpu.memory_space<vmem>>, vector<1x32xf32>
    tpu.vector_store %arg11[%c17, %c0_105], %145 {strides = array<i32>} : memref<36x32xf32, #tpu.memory_space<vmem>>, vector<1x32xf32>,
    %c1_i32_106 = arith.constant 1 : i32
    %147 = arith.addi %0, %c1_i32_106 : i32
    %148 = arith.index_cast %147 : i32 to index
    %c2_107 = arith.constant 2 : index
    %149 = memref.load %arg1[%148, %c2_107] : memref<2x16xi32, #tpu.memory_space<smem>>
    %c0_i32_108 = arith.constant 0 : i32
    %150 = arith.maxsi %149, %c0_i32_108 : i32
    %c49_i32_109 = arith.constant 49 : i32
    %151 = arith.minsi %150, %c49_i32_109 : i32
    %152 = arith.index_cast %151 : i32 to index
    %c0_110 = arith.constant 0 : index
    %153 = vector.load %arg2[%152, %c0_110] : memref<50x32xf32, #tpu.memory_space<vmem>>, vector<1x32xf32>
    %c18 = arith.constant 18 : index
    %c0_111 = arith.constant 0 : index
    %154 = vector.load %arg11[%c18, %c0_111] : memref<36x32xf32, #tpu.memory_space<vmem>>, vector<1x32xf32>
    tpu.vector_store %arg11[%c18, %c0_111], %153 {strides = array<i32>} : memref<36x32xf32, #tpu.memory_space<vmem>>, vector<1x32xf32>,
    %c1_i32_112 = arith.constant 1 : i32
    %155 = arith.addi %0, %c1_i32_112 : i32
    %156 = arith.index_cast %155 : i32 to index
    %c3_113 = arith.constant 3 : index
    %157 = memref.load %arg1[%156, %c3_113] : memref<2x16xi32, #tpu.memory_space<smem>>
    %c0_i32_114 = arith.constant 0 : i32
    %158 = arith.maxsi %157, %c0_i32_114 : i32
    %c49_i32_115 = arith.constant 49 : i32
    %159 = arith.minsi %158, %c49_i32_115 : i32
    %160 = arith.index_cast %159 : i32 to index
    %c0_116 = arith.constant 0 : index
    %161 = vector.load %arg2[%160, %c0_116] : memref<50x32xf32, #tpu.memory_space<vmem>>, vector<1x32xf32>
    %c19 = arith.constant 19 : index
    %c0_117 = arith.constant 0 : index
    %162 = vector.load %arg11[%c19, %c0_117] : memref<36x32xf32, #tpu.memory_space<vmem>>, vector<1x32xf32>
    tpu.vector_store %arg11[%c19, %c0_117], %161 {strides = array<i32>} : memref<36x32xf32, #tpu.memory_space<vmem>>, vector<1x32xf32>,
    %c1_i32_118 = arith.constant 1 : i32
    %163 = arith.addi %0, %c1_i32_118 : i32
    %164 = arith.index_cast %163 : i32 to index
    %c4_119 = arith.constant 4 : index
    %165 = memref.load %arg1[%164, %c4_119] : memref<2x16xi32, #tpu.memory_space<smem>>
    %c0_i32_120 = arith.constant 0 : i32
    %166 = arith.maxsi %165, %c0_i32_120 : i32
    %c49_i32_121 = arith.constant 49 : i32
    %167 = arith.minsi %166, %c49_i32_121 : i32
    %168 = arith.index_cast %167 : i32 to index
    %c0_122 = arith.constant 0 : index
    %169 = vector.load %arg2[%168, %c0_122] : memref<50x32xf32, #tpu.memory_space<vmem>>, vector<1x32xf32>
    %c20 = arith.constant 20 : index
    %c0_123 = arith.constant 0 : index
    %170 = vector.load %arg11[%c20, %c0_123] : memref<36x32xf32, #tpu.memory_space<vmem>>, vector<1x32xf32>
    tpu.vector_store %arg11[%c20, %c0_123], %169 {strides = array<i32>} : memref<36x32xf32, #tpu.memory_space<vmem>>, vector<1x32xf32>,
    %c1_i32_124 = arith.constant 1 : i32
    %171 = arith.addi %0, %c1_i32_124 : i32
    %172 = arith.index_cast %171 : i32 to index
    %c5_125 = arith.constant 5 : index
    %173 = memref.load %arg1[%172, %c5_125] : memref<2x16xi32, #tpu.memory_space<smem>>
    %c0_i32_126 = arith.constant 0 : i32
    %174 = arith.maxsi %173, %c0_i32_126 : i32
    %c49_i32_127 = arith.constant 49 : i32
    %175 = arith.minsi %174, %c49_i32_127 : i32
    %176 = arith.index_cast %175 : i32 to index
    %c0_128 = arith.constant 0 : index
    %177 = vector.load %arg2[%176, %c0_128] : memref<50x32xf32, #tpu.memory_space<vmem>>, vector<1x32xf32>
    %c21 = arith.constant 21 : index
    %c0_129 = arith.constant 0 : index
    %178 = vector.load %arg11[%c21, %c0_129] : memref<36x32xf32, #tpu.memory_space<vmem>>, vector<1x32xf32>
    tpu.vector_store %arg11[%c21, %c0_129], %177 {strides = array<i32>} : memref<36x32xf32, #tpu.memory_space<vmem>>, vector<1x32xf32>,
    %c1_i32_130 = arith.constant 1 : i32
    %179 = arith.addi %0, %c1_i32_130 : i32
    %180 = arith.index_cast %179 : i32 to index
    %c6_131 = arith.constant 6 : index
    %181 = memref.load %arg1[%180, %c6_131] : memref<2x16xi32, #tpu.memory_space<smem>>
    %c0_i32_132 = arith.constant 0 : i32
    %182 = arith.maxsi %181, %c0_i32_132 : i32
    %c49_i32_133 = arith.constant 49 : i32
    %183 = arith.minsi %182, %c49_i32_133 : i32
    %184 = arith.index_cast %183 : i32 to index
    %c0_134 = arith.constant 0 : index
    %185 = vector.load %arg2[%184, %c0_134] : memref<50x32xf32, #tpu.memory_space<vmem>>, vector<1x32xf32>
    %c22 = arith.constant 22 : index
    %c0_135 = arith.constant 0 : index
    %186 = vector.load %arg11[%c22, %c0_135] : memref<36x32xf32, #tpu.memory_space<vmem>>, vector<1x32xf32>
    tpu.vector_store %arg11[%c22, %c0_135], %185 {strides = array<i32>} : memref<36x32xf32, #tpu.memory_space<vmem>>, vector<1x32xf32>,
    %c1_i32_136 = arith.constant 1 : i32
    %187 = arith.addi %0, %c1_i32_136 : i32
    %188 = arith.index_cast %187 : i32 to index
    %c7_137 = arith.constant 7 : index
    %189 = memref.load %arg1[%188, %c7_137] : memref<2x16xi32, #tpu.memory_space<smem>>
    %c0_i32_138 = arith.constant 0 : i32
    %190 = arith.maxsi %189, %c0_i32_138 : i32
    %c49_i32_139 = arith.constant 49 : i32
    %191 = arith.minsi %190, %c49_i32_139 : i32
    %192 = arith.index_cast %191 : i32 to index
    %c0_140 = arith.constant 0 : index
    %193 = vector.load %arg2[%192, %c0_140] : memref<50x32xf32, #tpu.memory_space<vmem>>, vector<1x32xf32>
    %c23 = arith.constant 23 : index
    %c0_141 = arith.constant 0 : index
    %194 = vector.load %arg11[%c23, %c0_141] : memref<36x32xf32, #tpu.memory_space<vmem>>, vector<1x32xf32>
    tpu.vector_store %arg11[%c23, %c0_141], %193 {strides = array<i32>} : memref<36x32xf32, #tpu.memory_space<vmem>>, vector<1x32xf32>,
    %c1_i32_142 = arith.constant 1 : i32
    %195 = arith.addi %0, %c1_i32_142 : i32
    %196 = arith.index_cast %195 : i32 to index
    %c8_143 = arith.constant 8 : index
    %197 = memref.load %arg1[%196, %c8_143] : memref<2x16xi32, #tpu.memory_space<smem>>
    %c0_i32_144 = arith.constant 0 : i32
    %198 = arith.maxsi %197, %c0_i32_144 : i32
    %c49_i32_145 = arith.constant 49 : i32
    %199 = arith.minsi %198, %c49_i32_145 : i32
    %200 = arith.index_cast %199 : i32 to index
    %c0_146 = arith.constant 0 : index
    %201 = vector.load %arg2[%200, %c0_146] : memref<50x32xf32, #tpu.memory_space<vmem>>, vector<1x32xf32>
    %c24 = arith.constant 24 : index
    %c0_147 = arith.constant 0 : index
    %202 = vector.load %arg11[%c24, %c0_147] : memref<36x32xf32, #tpu.memory_space<vmem>>, vector<1x32xf32>
    tpu.vector_store %arg11[%c24, %c0_147], %201 {strides = array<i32>} : memref<36x32xf32, #tpu.memory_space<vmem>>, vector<1x32xf32>,
    %c1_i32_148 = arith.constant 1 : i32
    %203 = arith.addi %0, %c1_i32_148 : i32
    %204 = arith.index_cast %203 : i32 to index
    %c9_149 = arith.constant 9 : index
    %205 = memref.load %arg1[%204, %c9_149] : memref<2x16xi32, #tpu.memory_space<smem>>
    %c0_i32_150 = arith.constant 0 : i32
    %206 = arith.maxsi %205, %c0_i32_150 : i32
    %c49_i32_151 = arith.constant 49 : i32
    %207 = arith.minsi %206, %c49_i32_151 : i32
    %208 = arith.index_cast %207 : i32 to index
    %c0_152 = arith.constant 0 : index
    %209 = vector.load %arg2[%208, %c0_152] : memref<50x32xf32, #tpu.memory_space<vmem>>, vector<1x32xf32>
    %c25 = arith.constant 25 : index
    %c0_153 = arith.constant 0 : index
    %210 = vector.load %arg11[%c25, %c0_153] : memref<36x32xf32, #tpu.memory_space<vmem>>, vector<1x32xf32>
    tpu.vector_store %arg11[%c25, %c0_153], %209 {strides = array<i32>} : memref<36x32xf32, #tpu.memory_space<vmem>>, vector<1x32xf32>,
    %c1_i32_154 = arith.constant 1 : i32
    %211 = arith.addi %0, %c1_i32_154 : i32
    %212 = arith.index_cast %211 : i32 to index
    %c10_155 = arith.constant 10 : index
    %213 = memref.load %arg1[%212, %c10_155] : memref<2x16xi32, #tpu.memory_space<smem>>
    %c0_i32_156 = arith.constant 0 : i32
    %214 = arith.maxsi %213, %c0_i32_156 : i32
    %c49_i32_157 = arith.constant 49 : i32
    %215 = arith.minsi %214, %c49_i32_157 : i32
    %216 = arith.index_cast %215 : i32 to index
    %c0_158 = arith.constant 0 : index
    %217 = vector.load %arg2[%216, %c0_158] : memref<50x32xf32, #tpu.memory_space<vmem>>, vector<1x32xf32>
    %c26 = arith.constant 26 : index
    %c0_159 = arith.constant 0 : index
    %218 = vector.load %arg11[%c26, %c0_159] : memref<36x32xf32, #tpu.memory_space<vmem>>, vector<1x32xf32>
    tpu.vector_store %arg11[%c26, %c0_159], %217 {strides = array<i32>} : memref<36x32xf32, #tpu.memory_space<vmem>>, vector<1x32xf32>,
    %c1_i32_160 = arith.constant 1 : i32
    %219 = arith.addi %0, %c1_i32_160 : i32
    %220 = arith.index_cast %219 : i32 to index
    %c11_161 = arith.constant 11 : index
    %221 = memref.load %arg1[%220, %c11_161] : memref<2x16xi32, #tpu.memory_space<smem>>
    %c0_i32_162 = arith.constant 0 : i32
    %222 = arith.maxsi %221, %c0_i32_162 : i32
    %c49_i32_163 = arith.constant 49 : i32
    %223 = arith.minsi %222, %c49_i32_163 : i32
    %224 = arith.index_cast %223 : i32 to index
    %c0_164 = arith.constant 0 : index
    %225 = vector.load %arg2[%224, %c0_164] : memref<50x32xf32, #tpu.memory_space<vmem>>, vector<1x32xf32>
    %c27 = arith.constant 27 : index
    %c0_165 = arith.constant 0 : index
    %226 = vector.load %arg11[%c27, %c0_165] : memref<36x32xf32, #tpu.memory_space<vmem>>, vector<1x32xf32>
    tpu.vector_store %arg11[%c27, %c0_165], %225 {strides = array<i32>} : memref<36x32xf32, #tpu.memory_space<vmem>>, vector<1x32xf32>,
    %c1_i32_166 = arith.constant 1 : i32
    %227 = arith.addi %0, %c1_i32_166 : i32
    %228 = arith.index_cast %227 : i32 to index
    %c12_167 = arith.constant 12 : index
    %229 = memref.load %arg1[%228, %c12_167] : memref<2x16xi32, #tpu.memory_space<smem>>
    %c0_i32_168 = arith.constant 0 : i32
    %230 = arith.maxsi %229, %c0_i32_168 : i32
    %c49_i32_169 = arith.constant 49 : i32
    %231 = arith.minsi %230, %c49_i32_169 : i32
    %232 = arith.index_cast %231 : i32 to index
    %c0_170 = arith.constant 0 : index
    %233 = vector.load %arg2[%232, %c0_170] : memref<50x32xf32, #tpu.memory_space<vmem>>, vector<1x32xf32>
    %c28 = arith.constant 28 : index
    %c0_171 = arith.constant 0 : index
    %234 = vector.load %arg11[%c28, %c0_171] : memref<36x32xf32, #tpu.memory_space<vmem>>, vector<1x32xf32>
    tpu.vector_store %arg11[%c28, %c0_171], %233 {strides = array<i32>} : memref<36x32xf32, #tpu.memory_space<vmem>>, vector<1x32xf32>,
    %c1_i32_172 = arith.constant 1 : i32
    %235 = arith.addi %0, %c1_i32_172 : i32
    %236 = arith.index_cast %235 : i32 to index
    %c13_173 = arith.constant 13 : index
    %237 = memref.load %arg1[%236, %c13_173] : memref<2x16xi32, #tpu.memory_space<smem>>
    %c0_i32_174 = arith.constant 0 : i32
    %238 = arith.maxsi %237, %c0_i32_174 : i32
    %c49_i32_175 = arith.constant 49 : i32
    %239 = arith.minsi %238, %c49_i32_175 : i32
    %240 = arith.index_cast %239 : i32 to index
    %c0_176 = arith.constant 0 : index
    %241 = vector.load %arg2[%240, %c0_176] : memref<50x32xf32, #tpu.memory_space<vmem>>, vector<1x32xf32>
    %c29 = arith.constant 29 : index
    %c0_177 = arith.constant 0 : index
    %242 = vector.load %arg11[%c29, %c0_177] : memref<36x32xf32, #tpu.memory_space<vmem>>, vector<1x32xf32>
    tpu.vector_store %arg11[%c29, %c0_177], %241 {strides = array<i32>} : memref<36x32xf32, #tpu.memory_space<vmem>>, vector<1x32xf32>,
    %c1_i32_178 = arith.constant 1 : i32
    %243 = arith.addi %0, %c1_i32_178 : i32
    %244 = arith.index_cast %243 : i32 to index
    %c14_179 = arith.constant 14 : index
    %245 = memref.load %arg1[%244, %c14_179] : memref<2x16xi32, #tpu.memory_space<smem>>
    %c0_i32_180 = arith.constant 0 : i32
    %246 = arith.maxsi %245, %c0_i32_180 : i32
    %c49_i32_181 = arith.constant 49 : i32
    %247 = arith.minsi %246, %c49_i32_181 : i32
    %248 = arith.index_cast %247 : i32 to index
    %c0_182 = arith.constant 0 : index
    %249 = vector.load %arg2[%248, %c0_182] : memref<50x32xf32, #tpu.memory_space<vmem>>, vector<1x32xf32>
    %c30 = arith.constant 30 : index
    %c0_183 = arith.constant 0 : index
    %250 = vector.load %arg11[%c30, %c0_183] : memref<36x32xf32, #tpu.memory_space<vmem>>, vector<1x32xf32>
    tpu.vector_store %arg11[%c30, %c0_183], %249 {strides = array<i32>} : memref<36x32xf32, #tpu.memory_space<vmem>>, vector<1x32xf32>,
    %c1_i32_184 = arith.constant 1 : i32
    %251 = arith.addi %0, %c1_i32_184 : i32
    %252 = arith.index_cast %251 : i32 to index
    %c15_185 = arith.constant 15 : index
    %253 = memref.load %arg1[%252, %c15_185] : memref<2x16xi32, #tpu.memory_space<smem>>
    %c0_i32_186 = arith.constant 0 : i32
    %254 = arith.maxsi %253, %c0_i32_186 : i32
    %c49_i32_187 = arith.constant 49 : i32
    %255 = arith.minsi %254, %c49_i32_187 : i32
    %256 = arith.index_cast %255 : i32 to index
    %c0_188 = arith.constant 0 : index
    %257 = vector.load %arg2[%256, %c0_188] : memref<50x32xf32, #tpu.memory_space<vmem>>, vector<1x32xf32>
    %c31 = arith.constant 31 : index
    %c0_189 = arith.constant 0 : index
    %258 = vector.load %arg11[%c31, %c0_189] : memref<36x32xf32, #tpu.memory_space<vmem>>, vector<1x32xf32>
    tpu.vector_store %arg11[%c31, %c0_189], %257 {strides = array<i32>} : memref<36x32xf32, #tpu.memory_space<vmem>>, vector<1x32xf32>,
    %cst_190 = arith.constant 0.000000e+00 : f32
    %259 = vector.broadcast %cst_190 : f32 to vector<32x24xf32>
    %c0_191 = arith.constant 0 : index
    %c0_192 = arith.constant 0 : index
    %260 = vector.load %arg11[%c0_191, %c0_192] : memref<36x32xf32, #tpu.memory_space<vmem>>, vector<32x32xf32>
    %c0_193 = arith.constant 0 : index
    %c0_194 = arith.constant 0 : index
    %261 = vector.load %arg3[%c0_193, %c0_194] : memref<160x24xf32, #tpu.memory_space<vmem>>, vector<32x24xf32>
    %cst_195 = arith.constant dense<0.000000e+00> : vector<32x24xf32>
    %262 = tpu.matmul %260, %261, %cst_195 {dimension_numbers = #tpu.dot_dimension_numbers<[1], [0], [0], [1], [0, 0, 1, 1], [], []>} : vector<32x32xf32>, vector<32x24xf32>, vector<32x24xf32> -> vector<32x24xf32>
    %263 = arith.addf %259, %262 : vector<32x24xf32>
    %c1_196 = arith.constant 1 : index
    %c0_197 = arith.constant 0 : index
    %264 = vector.load %arg11[%c1_196, %c0_197] : memref<36x32xf32, #tpu.memory_space<vmem>>, vector<32x32xf32>
    %c32_198 = arith.constant 32 : index
    %c0_199 = arith.constant 0 : index
    %265 = vector.load %arg3[%c32_198, %c0_199] : memref<160x24xf32, #tpu.memory_space<vmem>>, vector<32x24xf32>
    %cst_200 = arith.constant dense<0.000000e+00> : vector<32x24xf32>
    %266 = tpu.matmul %264, %265, %cst_200 {dimension_numbers = #tpu.dot_dimension_numbers<[1], [0], [0], [1], [0, 0, 1, 1], [], []>} : vector<32x32xf32>, vector<32x24xf32>, vector<32x24xf32> -> vector<32x24xf32>
    %267 = arith.addf %263, %266 : vector<32x24xf32>
    %c2_201 = arith.constant 2 : index
    %c0_202 = arith.constant 0 : index
    %268 = vector.load %arg11[%c2_201, %c0_202] : memref<36x32xf32, #tpu.memory_space<vmem>>, vector<32x32xf32>
    %c64 = arith.constant 64 : index
    %c0_203 = arith.constant 0 : index
    %269 = vector.load %arg3[%c64, %c0_203] : memref<160x24xf32, #tpu.memory_space<vmem>>, vector<32x24xf32>
    %cst_204 = arith.constant dense<0.000000e+00> : vector<32x24xf32>
    %270 = tpu.matmul %268, %269, %cst_204 {dimension_numbers = #tpu.dot_dimension_numbers<[1], [0], [0], [1], [0, 0, 1, 1], [], []>} : vector<32x32xf32>, vector<32x24xf32>, vector<32x24xf32> -> vector<32x24xf32>
    %271 = arith.addf %267, %270 : vector<32x24xf32>
    %c3_205 = arith.constant 3 : index
    %c0_206 = arith.constant 0 : index
    %272 = vector.load %arg11[%c3_205, %c0_206] : memref<36x32xf32, #tpu.memory_space<vmem>>, vector<32x32xf32>
    %c96 = arith.constant 96 : index
    %c0_207 = arith.constant 0 : index
    %273 = vector.load %arg3[%c96, %c0_207] : memref<160x24xf32, #tpu.memory_space<vmem>>, vector<32x24xf32>
    %cst_208 = arith.constant dense<0.000000e+00> : vector<32x24xf32>
    %274 = tpu.matmul %272, %273, %cst_208 {dimension_numbers = #tpu.dot_dimension_numbers<[1], [0], [0], [1], [0, 0, 1, 1], [], []>} : vector<32x32xf32>, vector<32x24xf32>, vector<32x24xf32> -> vector<32x24xf32>
    %275 = arith.addf %271, %274 : vector<32x24xf32>
    %c4_209 = arith.constant 4 : index
    %c0_210 = arith.constant 0 : index
    %276 = vector.load %arg11[%c4_209, %c0_210] : memref<36x32xf32, #tpu.memory_space<vmem>>, vector<32x32xf32>
    %c128 = arith.constant 128 : index
    %c0_211 = arith.constant 0 : index
    %277 = vector.load %arg3[%c128, %c0_211] : memref<160x24xf32, #tpu.memory_space<vmem>>, vector<32x24xf32>
    %cst_212 = arith.constant dense<0.000000e+00> : vector<32x24xf32>
    %278 = tpu.matmul %276, %277, %cst_212 {dimension_numbers = #tpu.dot_dimension_numbers<[1], [0], [0], [1], [0, 0, 1, 1], [], []>} : vector<32x32xf32>, vector<32x24xf32>, vector<32x24xf32> -> vector<32x24xf32>
    %279 = arith.addf %275, %278 : vector<32x24xf32>
    %280 = tpu.iota {dimensions = array<i32: 0>} : vector<32x24xi32>
    %c16_i32 = arith.constant 16 : i32
    %c0_i32_213 = arith.constant 0 : i32
    %281 = arith.cmpi eq, %c16_i32, %c0_i32_213 : i32
    %c1_i32_214 = arith.constant 1 : i32
    %282 = arith.select %281, %c1_i32_214, %c16_i32 : i32
    %283 = vector.broadcast %282 : i32 to vector<32x24xi32>
    %284 = arith.remsi %280, %283 : vector<32x24xi32>
    %c0_i32_215 = arith.constant 0 : i32
    %285 = vector.broadcast %c0_i32_215 : i32 to vector<32x24xi32>
    %286 = arith.cmpi ne, %284, %285 : vector<32x24xi32>
    %c0_i32_216 = arith.constant 0 : i32
    %287 = vector.broadcast %c0_i32_216 : i32 to vector<32x24xi32>
    %288 = arith.cmpi slt, %284, %287 : vector<32x24xi32>
    %c0_i32_217 = arith.constant 0 : i32
    %289 = arith.cmpi slt, %282, %c0_i32_217 : i32
    %290 = vector.broadcast %289 : i1 to vector<32x24xi1>
    %291 = vector.broadcast %290 : vector<32x24xi1> to vector<32x24xi1>
    %292 = arith.xori %288, %291 : vector<32x24xi1>
    %293 = arith.andi %292, %286 : vector<32x24xi1>
    %294 = vector.broadcast %282 : i32 to vector<32x24xi32>
    %295 = arith.addi %284, %294 : vector<32x24xi32>
    %296 = arith.select %293, %295, %284 : vector<32x24xi1>, vector<32x24xi32>
    %c0_218 = arith.constant 0 : index
    %c0_219 = arith.constant 0 : index
    %297 = vector.load %arg9[%c0_218, %c0_219] : memref<1x24xi32, #tpu.memory_space<vmem>>, vector<1x24xi32>
    %298 = vector.broadcast %297 : vector<1x24xi32> to vector<32x24xi32>
    %299 = arith.cmpi slt, %296, %298 : vector<32x24xi32>
    %cst_220 = arith.constant 0xFF800000 : f32
    %300 = vector.broadcast %cst_220 : f32 to vector<32x24xf32>
    %301 = arith.select %299, %279, %300 : vector<32x24xi1>, vector<32x24xf32>
    %302 = vector.extract_strided_slice %301 {offsets = [0, 0], sizes = [16, 24], strides = [1, 1]} : vector<32x24xf32> to vector<16x24xf32>
    %cst_221 = arith.constant dense<0xFF800000> : vector<24xf32>
    %303 = vector.multi_reduction <maximumf>, %302, %cst_221 [0] : vector<16x24xf32> to vector<24xf32>
    %304 = vector.shape_cast %303 : vector<24xf32> to vector<1x24xf32>
    %305 = vector.extract_strided_slice %301 {offsets = [16, 0], sizes = [16, 24], strides = [1, 1]} : vector<32x24xf32> to vector<16x24xf32>
    %cst_222 = arith.constant dense<0xFF800000> : vector<24xf32>
    %306 = vector.multi_reduction <maximumf>, %305, %cst_222 [0] : vector<16x24xf32> to vector<24xf32>
    %307 = vector.shape_cast %306 : vector<24xf32> to vector<1x24xf32>
    %308 = tpu.concatenate %304, %307 in 0 : vector<1x24xf32>, vector<1x24xf32> -> vector<2x24xf32>
    %c0_223 = arith.constant 0 : index
    %c0_224 = arith.constant 0 : index
    %309 = vector.load %arg6[%c0_223, %c0_224] : memref<1x24xf32, #tpu.memory_space<vmem>>, vector<1x24xf32>
    %310 = vector.broadcast %309 : vector<1x24xf32> to vector<2x24xf32>
    %311 = arith.addf %308, %310 : vector<2x24xf32>
    %cst_225 = arith.constant 0.000000e+00 : f32
    %312 = vector.broadcast %cst_225 : f32 to vector<2x24xf32>
    %313 = arith.maximumf %311, %312 : vector<2x24xf32>
    %c0_226 = arith.constant 0 : index
    %c0_227 = arith.constant 0 : index
    %314 = vector.load %arg4[%c0_226, %c0_227] : memref<24x32xf32, #tpu.memory_space<vmem>>, vector<24x32xf32>
    %cst_228 = arith.constant dense<0.000000e+00> : vector<2x32xf32>
    %315 = tpu.matmul %313, %314, %cst_228 {dimension_numbers = #tpu.dot_dimension_numbers<[1], [0], [0], [1], [0, 0, 1, 1], [], []>} : vector<2x24xf32>, vector<24x32xf32>, vector<2x32xf32> -> vector<2x32xf32>
    %c0_229 = arith.constant 0 : index
    %c0_230 = arith.constant 0 : index
    %316 = vector.load %arg7[%c0_229, %c0_230] : memref<1x32xf32, #tpu.memory_space<vmem>>, vector<1x32xf32>
    %317 = vector.broadcast %316 : vector<1x32xf32> to vector<2x32xf32>
    %318 = arith.addf %315, %317 : vector<2x32xf32>
    %cst_231 = arith.constant 0.000000e+00 : f32
    %319 = vector.broadcast %cst_231 : f32 to vector<2x32xf32>
    %320 = arith.maximumf %318, %319 : vector<2x32xf32>
    %c0_232 = arith.constant 0 : index
    %c0_233 = arith.constant 0 : index
    %321 = vector.load %arg5[%c0_232, %c0_233] : memref<32x4xf32, #tpu.memory_space<vmem>>, vector<32x4xf32>
    %cst_234 = arith.constant dense<0.000000e+00> : vector<2x4xf32>
    %322 = tpu.matmul %320, %321, %cst_234 {dimension_numbers = #tpu.dot_dimension_numbers<[1], [0], [0], [1], [0, 0, 1, 1], [], []>} : vector<2x32xf32>, vector<32x4xf32>, vector<2x4xf32> -> vector<2x4xf32>
    %c0_235 = arith.constant 0 : index
    %c0_236 = arith.constant 0 : index
    %323 = vector.load %arg8[%c0_235, %c0_236] : memref<1x4xf32, #tpu.memory_space<vmem>>, vector<1x4xf32>
    %324 = vector.broadcast %323 : vector<1x4xf32> to vector<2x4xf32>
    %325 = arith.addf %322, %324 : vector<2x4xf32>
    %326 = arith.negf %325 : vector<2x4xf32>
    %327 = math.exp %326 : vector<2x4xf32>
    %cst_237 = arith.constant 1.000000e+00 : f32
    %328 = vector.broadcast %cst_237 : f32 to vector<2x4xf32>
    %329 = arith.addf %328, %327 : vector<2x4xf32>
    %330 = arith.divf %328, %329 : vector<2x4xf32>
    %c0_238 = arith.constant 0 : index
    %c0_239 = arith.constant 0 : index
    %331 = vector.load %arg10[%c0_238, %c0_239] : memref<2x4xf32, #tpu.memory_space<vmem>>, vector<2x4xf32>
    tpu.vector_store %arg10[%c0_238, %c0_239], %330 {strides = array<i32>} : memref<2x4xf32, #tpu.memory_space<vmem>>, vector<2x4xf32>,
    return
  }
  func.func @transform_0(%arg0: i32, %arg1: memref<2x16xi32, #tpu.memory_space<smem>>) -> (i32, i32) {
    %c0_i32 = arith.constant 0 : i32
    %c0_i32_0 = arith.constant 0 : i32
    %c0_i32_1 = arith.constant 0 : i32
    return %c0_i32, %c0_i32_0 : i32, i32
  }
  func.func @transform_1(%arg0: i32, %arg1: memref<2x16xi32, #tpu.memory_space<smem>>) -> (i32, i32) {
    %c0_i32 = arith.constant 0 : i32
    %c0_i32_0 = arith.constant 0 : i32
    %c0_i32_1 = arith.constant 0 : i32
    return %c0_i32, %c0_i32_0 : i32, i32
  }
  func.func @transform_2(%arg0: i32, %arg1: memref<2x16xi32, #tpu.memory_space<smem>>) -> (i32, i32) {
    %c0_i32 = arith.constant 0 : i32
    %c0_i32_0 = arith.constant 0 : i32
    %c0_i32_1 = arith.constant 0 : i32
    return %c0_i32, %c0_i32_0 : i32, i32
  }
  func.func @transform_3(%arg0: i32, %arg1: memref<2x16xi32, #tpu.memory_space<smem>>) -> (i32, i32) {
    %c0_i32 = arith.constant 0 : i32
    %c0_i32_0 = arith.constant 0 : i32
    %c0_i32_1 = arith.constant 0 : i32
    return %c0_i32, %c0_i32_0 : i32, i32
  }
  func.func @transform_4(%arg0: i32, %arg1: memref<2x16xi32, #tpu.memory_space<smem>>) -> (i32, i32) {
    %c0_i32 = arith.constant 0 : i32
    %c0_i32_0 = arith.constant 0 : i32
    %c0_i32_1 = arith.constant 0 : i32
    return %c0_i32, %c0_i32_0 : i32, i32
  }
  func.func @transform_5(%arg0: i32, %arg1: memref<2x16xi32, #tpu.memory_space<smem>>) -> (i32, i32) {
    %c0_i32 = arith.constant 0 : i32
    %c0_i32_0 = arith.constant 0 : i32
    %c0_i32_1 = arith.constant 0 : i32
    return %c0_i32, %c0_i32_0 : i32, i32
  }
  func.func @transform_6(%arg0: i32, %arg1: memref<2x16xi32, #tpu.memory_space<smem>>) -> (i32, i32) {
    %c0_i32 = arith.constant 0 : i32
    %c0_i32_0 = arith.constant 0 : i32
    %c0_i32_1 = arith.constant 0 : i32
    return %c0_i32, %c0_i32_0 : i32, i32
  }
  func.func @transform_7(%arg0: i32, %arg1: memref<2x16xi32, #tpu.memory_space<smem>>) -> (i32, i32) {
    %c0_i32 = arith.constant 0 : i32
    %c0_i32_0 = arith.constant 0 : i32
    %c0_i32_1 = arith.constant 0 : i32
    return %c0_i32, %c0_i32_0 : i32, i32
  }
  func.func @transform_8(%arg0: i32, %arg1: memref<2x16xi32, #tpu.memory_space<smem>>) -> (i32, i32) {
    %c0_i32 = arith.constant 0 : i32
    %c0_i32_0 = arith.constant 0 : i32
    return %arg0, %c0_i32 : i32, i32
  }
}

</mosaic_0001>

<llo_original>
// kernel: tpu_custom_call.1
$region0: #{tpu_custom_call.1}
  #allocation0 [shape = 'u32[]', space=smem, size = 0x4, offset = 0x4, fixed_abs, tag = 'smem constant byte address 0x4 - core index']
  #allocation1 [shape = 'u32[72,128]{1,0:T(1,128)}', space=vmem, size = 0x9000, scoped, tag = 'internal scratch']
  #allocation2 [shape = 'f32[36,32]{1,0:T(8,128)}', space=vmem, size = 0x5000, scoped, tag = 'scratch operand']
  #allocation3 [shape = 's32[1]{0}', space=sflag, size = 0x4, scoped, tag = 'scoped memory for tpu_custom_call.1']
  #allocation4 [shape = 'u8[1024]{0}', space=smem, size = 0x400, scoped, tag = 'prefetched SMEM operand 0']
  %s0 = inlined_call_operand.vmem [shape: s32[2,16], index: 0, kind: input, shape index: {}]
  %s1 = inlined_call_operand.vmem [shape: f32[50,32], index: 1, kind: input, shape index: {}]
  %s2 = inlined_call_operand.vmem [shape: f32[160,24], index: 2, kind: input, shape index: {}]
  %s3 = inlined_call_operand.vmem [shape: f32[24,32], index: 3, kind: input, shape index: {}]
  %s4 = inlined_call_operand.vmem [shape: f32[32,4], index: 4, kind: input, shape index: {}]
  %s5 = inlined_call_operand.vmem [shape: f32[1,24], index: 5, kind: input, shape index: {}]
  %s6 = inlined_call_operand.vmem [shape: f32[1,32], index: 6, kind: input, shape index: {}]
  %s7 = inlined_call_operand.vmem [shape: f32[1,4], index: 7, kind: input, shape index: {}]
  %s8 = inlined_call_operand.vmem [shape: s32[1,24], index: 8, kind: input, shape index: {}]
  %s9 = inlined_call_operand.hbm [shape: f32[2,4], index: 9, kind: output, shape index: {}]
  %s10 = sld [smem:[#allocation0]]
  $region42: #{tpu_custom_call.1} parent=0
    _
  %s12 = ssub.s32 1, %s10
  %s13 = scalar_select 0, %s12, %s10
  %s15 = sshll.u32 %s0, 4
  %s16 = int_to_ptr.vmem [resolvable:$true] %s15
  %18 = dma.vmem_to_smem %s16, 32, [#allocation4], [#allocation3]
  %20 = dma.done [#allocation3], 32
  %21 = sfence
  $region1: #{tpu_custom_call.1} parent=0
    #allocation5 [shape = 'u8[1024]{0}', space=vmem, size = 0x400, scoped, tag = 'output window, operand 0, single buffered']
    #allocation6 [shape = 's32[1]{0}', space=sflag, size = 0x4, scoped, tag = 'scoped memory for tpu_custom_call.1']
    %22 = vsyncpa [#allocation6], 0
    // Predicated region
    $region2: #{tpu_custom_call.1} parent=1 // pred_check
      _
    $region3: #{tpu_custom_call.1} parent=1 // pred_check_branch
      %24 = sbr.rel (0) target = $region5
    $region4: #{tpu_custom_call.1} parent=1 // pred_region
      _
    $region5: #{tpu_custom_call.1} parent=1 // pred_fallthru
      _
    // Predicated region
    $region6: #{tpu_custom_call.1} parent=1 // pred_check
      _
    $region7: #{tpu_custom_call.1} parent=1 // pred_check_branch
      %26 = sbr.rel (0) target = $region9
    $region8: #{tpu_custom_call.1} parent=1 // pred_region
      _
    $region9: #{tpu_custom_call.1} parent=1 // pred_fallthru
      _
    // Predicated region
    $region10: #{tpu_custom_call.1} parent=1 // pred_check
      _
    $region11: #{tpu_custom_call.1} parent=1 // pred_check_branch
      %28 = sbr.rel (0) target = $region13
    $region12: #{tpu_custom_call.1} parent=1 // pred_region
      _
    $region13: #{tpu_custom_call.1} parent=1 // pred_fallthru
      _
    // Predicated region
    $region14: #{tpu_custom_call.1} parent=1 // pred_check
      _
    $region15: #{tpu_custom_call.1} parent=1 // pred_check_branch
      %30 = sbr.rel (0) target = $region17
    $region16: #{tpu_custom_call.1} parent=1 // pred_region
      _
    $region17: #{tpu_custom_call.1} parent=1 // pred_fallthru
      _
    // Predicated region
    $region18: #{tpu_custom_call.1} parent=1 // pred_check
      _
    $region19: #{tpu_custom_call.1} parent=1 // pred_check_branch
      %32 = sbr.rel (0) target = $region21
    $region20: #{tpu_custom_call.1} parent=1 // pred_region
      _
    $region21: #{tpu_custom_call.1} parent=1 // pred_fallthru
      _
    // Predicated region
    $region22: #{tpu_custom_call.1} parent=1 // pred_check
      _
    $region23: #{tpu_custom_call.1} parent=1 // pred_check_branch
      %34 = sbr.rel (0) target = $region25
    $region24: #{tpu_custom_call.1} parent=1 // pred_region
      _
    $region25: #{tpu_custom_call.1} parent=1 // pred_fallthru
      _
    // Predicated region
    $region26: #{tpu_custom_call.1} parent=1 // pred_check
      _
    $region27: #{tpu_custom_call.1} parent=1 // pred_check_branch
      %36 = sbr.rel (0) target = $region29
    $region28: #{tpu_custom_call.1} parent=1 // pred_region
      _
    $region29: #{tpu_custom_call.1} parent=1 // pred_fallthru
      _
    // Predicated region
    $region30: #{tpu_custom_call.1} parent=1 // pred_check
      _
    $region31: #{tpu_custom_call.1} parent=1 // pred_check_branch
      %38 = sbr.rel (0) target = $region33
    $region32: #{tpu_custom_call.1} parent=1 // pred_region
      _
    $region33: #{tpu_custom_call.1} parent=1 // pred_fallthru
      _
    %s39 = smul.u32 0, 2
    %vm40 = vcmask 257024
    %41 = vst.msk [vmem:[#allocation2 + $0x20] sm:$0xf] %vm40, 0.0
    %s42 = smul.u32 %s39, 128
    %s43 = sld [smem:[#allocation4 + %s42]]
    %p44 = scmp.gt.s32.totalorder %s43, 0
    %s45 = scalar_select %p44, %s43, 0
    %p46 = scmp.lt.s32.totalorder %s45, 49
    %s47 = scalar_select %p46, %s45, 49
    %s48 = scalar_lea.vmem %s1, %s47
    %v49 = vld [vmem:[%s48] sm:$0x1]
    %vm50 = vcmask 253952
    %51 = vst.msk [vmem:[#allocation2] sm:$0x1] %vm50, %v49
    %s52 = sadd.s32 %s42, 1
    %s53 = sld [smem:[#allocation4 + %s52]]
    %p54 = scmp.gt.s32.totalorder %s53, 0
    %s55 = scalar_select %p54, %s53, 0
    %p56 = scmp.lt.s32.totalorder %s55, 49
    %s57 = scalar_select %p56, %s55, 49
    %s58 = scalar_lea.vmem %s1, %s57
    %v59 = vld [vmem:[%s58] sm:$0x1]
    %60 = vst.msk [vmem:[#allocation2 + $0x1] sm:$0x1] %vm50, %v59
    %s61 = sadd.s32 %s42, 2
    %s62 = sld [smem:[#allocation4 + %s61]]
    %p63 = scmp.gt.s32.totalorder %s62, 0
    %s64 = scalar_select %p63, %s62, 0
    %p65 = scmp.lt.s32.totalorder %s64, 49
    %s66 = scalar_select %p65, %s64, 49
    %s67 = scalar_lea.vmem %s1, %s66
    %v68 = vld [vmem:[%s67] sm:$0x1]
    %69 = vst.msk [vmem:[#allocation2 + $0x2] sm:$0x1] %vm50, %v68
    %s70 = sadd.s32 %s42, 3
    %s71 = sld [smem:[#allocation4 + %s70]]
    %p72 = scmp.gt.s32.totalorder %s71, 0
    %s73 = scalar_select %p72, %s71, 0
    %p74 = scmp.lt.s32.totalorder %s73, 49
    %s75 = scalar_select %p74, %s73, 49
    %s76 = scalar_lea.vmem %s1, %s75
    %v77 = vld [vmem:[%s76] sm:$0x1]
    %78 = vst.msk [vmem:[#allocation2 + $0x3] sm:$0x1] %vm50, %v77
    %s79 = sadd.s32 %s42, 4
    %s80 = sld [smem:[#allocation4 + %s79]]
    %p81 = scmp.gt.s32.totalorder %s80, 0
    %s82 = scalar_select %p81, %s80, 0
    %p83 = scmp.lt.s32.totalorder %s82, 49
    %s84 = scalar_select %p83, %s82, 49
    %s85 = scalar_lea.vmem %s1, %s84
    %v86 = vld [vmem:[%s85] sm:$0x1]
    %87 = vst.msk [vmem:[#allocation2 + $0x4] sm:$0x1] %vm50, %v86
    %s88 = sadd.s32 %s42, 5
    %s89 = sld [smem:[#allocation4 + %s88]]
    %p90 = scmp.gt.s32.totalorder %s89, 0
    %s91 = scalar_select %p90, %s89, 0
    %p92 = scmp.lt.s32.totalorder %s91, 49
    %s93 = scalar_select %p92, %s91, 49
    %s94 = scalar_lea.vmem %s1, %s93
    %v95 = vld [vmem:[%s94] sm:$0x1]
    %96 = vst.msk [vmem:[#allocation2 + $0x5] sm:$0x1] %vm50, %v95
    %s97 = sadd.s32 %s42, 6
    %s98 = sld [smem:[#allocation4 + %s97]]
    %p99 = scmp.gt.s32.totalorder %s98, 0
    %s100 = scalar_select %p99, %s98, 0
    %p101 = scmp.lt.s32.totalorder %s100, 49
    %s102 = scalar_select %p101, %s100, 49
    %s103 = scalar_lea.vmem %s1, %s102
    %v104 = vld [vmem:[%s103] sm:$0x1]
    %105 = vst.msk [vmem:[#allocation2 + $0x6] sm:$0x1] %vm50, %v104
    %s106 = sadd.s32 %s42, 7
    %s107 = sld [smem:[#allocation4 + %s106]]
    %p108 = scmp.gt.s32.totalorder %s107, 0
    %s109 = scalar_select %p108, %s107, 0
    %p110 = scmp.lt.s32.totalorder %s109, 49
    %s111 = scalar_select %p110, %s109, 49
    %s112 = scalar_lea.vmem %s1, %s111
    %v113 = vld [vmem:[%s112] sm:$0x1]
    %114 = vst.msk [vmem:[#allocation2 + $0x7] sm:$0x1] %vm50, %v113
    %s115 = sadd.s32 %s42, 8
    %s116 = sld [smem:[#allocation4 + %s115]]
    %p117 = scmp.gt.s32.totalorder %s116, 0
    %s118 = scalar_select %p117, %s116, 0
    %p119 = scmp.lt.s32.totalorder %s118, 49
    %s120 = scalar_select %p119, %s118, 49
    %s121 = scalar_lea.vmem %s1, %s120
    %v122 = vld [vmem:[%s121] sm:$0x1]
    %123 = vst.msk [vmem:[#allocation2 + $0x8] sm:$0x1] %vm50, %v122
    %s124 = sadd.s32 %s42, 9
    %s125 = sld [smem:[#allocation4 + %s124]]
    %p126 = scmp.gt.s32.totalorder %s125, 0
    %s127 = scalar_select %p126, %s125, 0
    %p128 = scmp.lt.s32.totalorder %s127, 49
    %s129 = scalar_select %p128, %s127, 49
    %s130 = scalar_lea.vmem %s1, %s129
    %v131 = vld [vmem:[%s130] sm:$0x1]
    %132 = vst.msk [vmem:[#allocation2 + $0x9] sm:$0x1] %vm50, %v131
    %s133 = sadd.s32 %s42, 10
    %s134 = sld [smem:[#allocation4 + %s133]]
    %p135 = scmp.gt.s32.totalorder %s134, 0
    %s136 = scalar_select %p135, %s134, 0
    %p137 = scmp.lt.s32.totalorder %s136, 49
    %s138 = scalar_select %p137, %s136, 49
    %s139 = scalar_lea.vmem %s1, %s138
    %v140 = vld [vmem:[%s139] sm:$0x1]
    %141 = vst.msk [vmem:[#allocation2 + $0xa] sm:$0x1] %vm50, %v140
    %s142 = sadd.s32 %s42, 11
    %s143 = sld [smem:[#allocation4 + %s142]]
    %p144 = scmp.gt.s32.totalorder %s143, 0
    %s145 = scalar_select %p144, %s143, 0
    %p146 = scmp.lt.s32.totalorder %s145, 49
    %s147 = scalar_select %p146, %s145, 49
    %s148 = scalar_lea.vmem %s1, %s147
    %v149 = vld [vmem:[%s148] sm:$0x1]
    %150 = vst.msk [vmem:[#allocation2 + $0xb] sm:$0x1] %vm50, %v149
    %s151 = sadd.s32 %s42, 12
    %s152 = sld [smem:[#allocation4 + %s151]]
    %p153 = scmp.gt.s32.totalorder %s152, 0
    %s154 = scalar_select %p153, %s152, 0
    %p155 = scmp.lt.s32.totalorder %s154, 49
    %s156 = scalar_select %p155, %s154, 49
    %s157 = scalar_lea.vmem %s1, %s156
    %v158 = vld [vmem:[%s157] sm:$0x1]
    %159 = vst.msk [vmem:[#allocation2 + $0xc] sm:$0x1] %vm50, %v158
    %s160 = sadd.s32 %s42, 13
    %s161 = sld [smem:[#allocation4 + %s160]]
    %p162 = scmp.gt.s32.totalorder %s161, 0
    %s163 = scalar_select %p162, %s161, 0
    %p164 = scmp.lt.s32.totalorder %s163, 49
    %s165 = scalar_select %p164, %s163, 49
    %s166 = scalar_lea.vmem %s1, %s165
    %v167 = vld [vmem:[%s166] sm:$0x1]
    %168 = vst.msk [vmem:[#allocation2 + $0xd] sm:$0x1] %vm50, %v167
    %s169 = sadd.s32 %s42, 14
    %s170 = sld [smem:[#allocation4 + %s169]]
    %p171 = scmp.gt.s32.totalorder %s170, 0
    %s172 = scalar_select %p171, %s170, 0
    %p173 = scmp.lt.s32.totalorder %s172, 49
    %s174 = scalar_select %p173, %s172, 49
    %s175 = scalar_lea.vmem %s1, %s174
    %v176 = vld [vmem:[%s175] sm:$0x1]
    %177 = vst.msk [vmem:[#allocation2 + $0xe] sm:$0x1] %vm50, %v176
    %s178 = sadd.s32 %s42, 15
    %s179 = sld [smem:[#allocation4 + %s178]]
    %p180 = scmp.gt.s32.totalorder %s179, 0
    %s181 = scalar_select %p180, %s179, 0
    %p182 = scmp.lt.s32.totalorder %s181, 49
    %s183 = scalar_select %p182, %s181, 49
    %s184 = scalar_lea.vmem %s1, %s183
    %v185 = vld [vmem:[%s184] sm:$0x1]
    %186 = vst.msk [vmem:[#allocation2 + $0xf] sm:$0x1] %vm50, %v185
    %s187 = sadd.s32 %s39, 1
    %s188 = smul.u32 %s187, 128
    %s189 = sld [smem:[#allocation4 + %s188]]
    %p190 = scmp.gt.s32.totalorder %s189, 0
    %s191 = scalar_select %p190, %s189, 0
    %p192 = scmp.lt.s32.totalorder %s191, 49
    %s193 = scalar_select %p192, %s191, 49
    %s194 = scalar_lea.vmem %s1, %s193
    %v195 = vld [vmem:[%s194] sm:$0x1]
    %196 = vst.msk [vmem:[#allocation2 + $0x10] sm:$0x1] %vm50, %v195
    %s197 = sadd.s32 %s188, 1
    %s198 = sld [smem:[#allocation4 + %s197]]
    %p199 = scmp.gt.s32.totalorder %s198, 0
    %s200 = scalar_select %p199, %s198, 0
    %p201 = scmp.lt.s32.totalorder %s200, 49
    %s202 = scalar_select %p201, %s200, 49
    %s203 = scalar_lea.vmem %s1, %s202
    %v204 = vld [vmem:[%s203] sm:$0x1]
    %205 = vst.msk [vmem:[#allocation2 + $0x11] sm:$0x1] %vm50, %v204
    %s206 = sadd.s32 %s188, 2
    %s207 = sld [smem:[#allocation4 + %s206]]
    %p208 = scmp.gt.s32.totalorder %s207, 0
    %s209 = scalar_select %p208, %s207, 0
    %p210 = scmp.lt.s32.totalorder %s209, 49
    %s211 = scalar_select %p210, %s209, 49
    %s212 = scalar_lea.vmem %s1, %s211
    %v213 = vld [vmem:[%s212] sm:$0x1]
    %214 = vst.msk [vmem:[#allocation2 + $0x12] sm:$0x1] %vm50, %v213
    %s215 = sadd.s32 %s188, 3
    %s216 = sld [smem:[#allocation4 + %s215]]
    %p217 = scmp.gt.s32.totalorder %s216, 0
    %s218 = scalar_select %p217, %s216, 0
    %p219 = scmp.lt.s32.totalorder %s218, 49
    %s220 = scalar_select %p219, %s218, 49
    %s221 = scalar_lea.vmem %s1, %s220
    %v222 = vld [vmem:[%s221] sm:$0x1]
    %223 = vst.msk [vmem:[#allocation2 + $0x13] sm:$0x1] %vm50, %v222
    %s224 = sadd.s32 %s188, 4
    %s225 = sld [smem:[#allocation4 + %s224]]
    %p226 = scmp.gt.s32.totalorder %s225, 0
    %s227 = scalar_select %p226, %s225, 0
    %p228 = scmp.lt.s32.totalorder %s227, 49
    %s229 = scalar_select %p228, %s227, 49
    %s230 = scalar_lea.vmem %s1, %s229
    %v231 = vld [vmem:[%s230] sm:$0x1]
    %232 = vst.msk [vmem:[#allocation2 + $0x14] sm:$0x1] %vm50, %v231
    %s233 = sadd.s32 %s188, 5
    %s234 = sld [smem:[#allocation4 + %s233]]
    %p235 = scmp.gt.s32.totalorder %s234, 0
    %s236 = scalar_select %p235, %s234, 0
    %p237 = scmp.lt.s32.totalorder %s236, 49
    %s238 = scalar_select %p237, %s236, 49
    %s239 = scalar_lea.vmem %s1, %s238
    %v240 = vld [vmem:[%s239] sm:$0x1]
    %241 = vst.msk [vmem:[#allocation2 + $0x15] sm:$0x1] %vm50, %v240
    %s242 = sadd.s32 %s188, 6
    %s243 = sld [smem:[#allocation4 + %s242]]
    %p244 = scmp.gt.s32.totalorder %s243, 0
    %s245 = scalar_select %p244, %s243, 0
    %p246 = scmp.lt.s32.totalorder %s245, 49
    %s247 = scalar_select %p246, %s245, 49
    %s248 = scalar_lea.vmem %s1, %s247
    %v249 = vld [vmem:[%s248] sm:$0x1]
    %250 = vst.msk [vmem:[#allocation2 + $0x16] sm:$0x1] %vm50, %v249
    %s251 = sadd.s32 %s188, 7
    %s252 = sld [smem:[#allocation4 + %s251]]
    %p253 = scmp.gt.s32.totalorder %s252, 0
    %s254 = scalar_select %p253, %s252, 0
    %p255 = scmp.lt.s32.totalorder %s254, 49
    %s256 = scalar_select %p255, %s254, 49
    %s257 = scalar_lea.vmem %s1, %s256
    %v258 = vld [vmem:[%s257] sm:$0x1]
    %259 = vst.msk [vmem:[#allocation2 + $0x17] sm:$0x1] %vm50, %v258
    %s260 = sadd.s32 %s188, 8
    %s261 = sld [smem:[#allocation4 + %s260]]
    %p262 = scmp.gt.s32.totalorder %s261, 0
    %s263 = scalar_select %p262, %s261, 0
    %p264 = scmp.lt.s32.totalorder %s263, 49
    %s265 = scalar_select %p264, %s263, 49
    %s266 = scalar_lea.vmem %s1, %s265
    %v267 = vld [vmem:[%s266] sm:$0x1]
    %268 = vst.msk [vmem:[#allocation2 + $0x18] sm:$0x1] %vm50, %v267
    %s269 = sadd.s32 %s188, 9
    %s270 = sld [smem:[#allocation4 + %s269]]
    %p271 = scmp.gt.s32.totalorder %s270, 0
    %s272 = scalar_select %p271, %s270, 0
    %p273 = scmp.lt.s32.totalorder %s272, 49
    %s274 = scalar_select %p273, %s272, 49
    %s275 = scalar_lea.vmem %s1, %s274
    %v276 = vld [vmem:[%s275] sm:$0x1]
    %277 = vst.msk [vmem:[#allocation2 + $0x19] sm:$0x1] %vm50, %v276
    %s278 = sadd.s32 %s188, 10
    %s279 = sld [smem:[#allocation4 + %s278]]
    %p280 = scmp.gt.s32.totalorder %s279, 0
    %s281 = scalar_select %p280, %s279, 0
    %p282 = scmp.lt.s32.totalorder %s281, 49
    %s283 = scalar_select %p282, %s281, 49
    %s284 = scalar_lea.vmem %s1, %s283
    %v285 = vld [vmem:[%s284] sm:$0x1]
    %286 = vst.msk [vmem:[#allocation2 + $0x1a] sm:$0x1] %vm50, %v285
    %s287 = sadd.s32 %s188, 11
    %s288 = sld [smem:[#allocation4 + %s287]]
    %p289 = scmp.gt.s32.totalorder %s288, 0
    %s290 = scalar_select %p289, %s288, 0
    %p291 = scmp.lt.s32.totalorder %s290, 49
    %s292 = scalar_select %p291, %s290, 49
    %s293 = scalar_lea.vmem %s1, %s292
    %v294 = vld [vmem:[%s293] sm:$0x1]
    %295 = vst.msk [vmem:[#allocation2 + $0x1b] sm:$0x1] %vm50, %v294
    %s296 = sadd.s32 %s188, 12
    %s297 = sld [smem:[#allocation4 + %s296]]
    %p298 = scmp.gt.s32.totalorder %s297, 0
    %s299 = scalar_select %p298, %s297, 0
    %p300 = scmp.lt.s32.totalorder %s299, 49
    %s301 = scalar_select %p300, %s299, 49
    %s302 = scalar_lea.vmem %s1, %s301
    %v303 = vld [vmem:[%s302] sm:$0x1]
    %304 = vst.msk [vmem:[#allocation2 + $0x1c] sm:$0x1] %vm50, %v303
    %s305 = sadd.s32 %s188, 13
    %s306 = sld [smem:[#allocation4 + %s305]]
    %p307 = scmp.gt.s32.totalorder %s306, 0
    %s308 = scalar_select %p307, %s306, 0
    %p309 = scmp.lt.s32.totalorder %s308, 49
    %s310 = scalar_select %p309, %s308, 49
    %s311 = scalar_lea.vmem %s1, %s310
    %v312 = vld [vmem:[%s311] sm:$0x1]
    %313 = vst.msk [vmem:[#allocation2 + $0x1d] sm:$0x1] %vm50, %v312
    %s314 = sadd.s32 %s188, 14
    %s315 = sld [smem:[#allocation4 + %s314]]
    %p316 = scmp.gt.s32.totalorder %s315, 0
    %s317 = scalar_select %p316, %s315, 0
    %p318 = scmp.lt.s32.totalorder %s317, 49
    %s319 = scalar_select %p318, %s317, 49
    %s320 = scalar_lea.vmem %s1, %s319
    %v321 = vld [vmem:[%s320] sm:$0x1]
    %322 = vst.msk [vmem:[#allocation2 + $0x1e] sm:$0x1] %vm50, %v321
    %s323 = sadd.s32 %s188, 15
    %s324 = sld [smem:[#allocation4 + %s323]]
    %p325 = scmp.gt.s32.totalorder %s324, 0
    %s326 = scalar_select %p325, %s324, 0
    %p327 = scmp.lt.s32.totalorder %s326, 49
    %s328 = scalar_select %p327, %s326, 49
    %s329 = scalar_lea.vmem %s1, %s328
    %v330 = vld [vmem:[%s329] sm:$0x1]
    %331 = vst.msk [vmem:[#allocation2 + $0x1f] sm:$0x1] %vm50, %v330
    %v332 = vld [vmem:[#allocation2] sm:$0xff]
    %v333 = vld [vmem:[#allocation2 + $0x8] sm:$0xff]
    %v334 = vld [vmem:[#allocation2 + $0x10] sm:$0xff]
    %v335 = vld [vmem:[#allocation2 + $0x18] sm:$0xff]
    %v336 = vld [vmem:[%s2] sm:$0xff]
    %v337 = vld [vmem:[%s2 + $0x8] sm:$0xff]
    %v338 = vld [vmem:[%s2 + $0x10] sm:$0xff]
    %v339 = vld [vmem:[%s2 + $0x18] sm:$0xff]
    %v340 = vld [vmem:[#allocation2 + $0x1] sm:$0xff]
    %v341 = vld [vmem:[#allocation2 + $0x9] sm:$0xff]
    %v342 = vld [vmem:[#allocation2 + $0x11] sm:$0xff]
    %v343 = vld [vmem:[#allocation2 + $0x19] sm:$0xff]
    %v344 = vld [vmem:[%s2 + $0x20] sm:$0xff]
    %v345 = vld [vmem:[%s2 + $0x28] sm:$0xff]
    %v346 = vld [vmem:[%s2 + $0x30] sm:$0xff]
    %v347 = vld [vmem:[%s2 + $0x38] sm:$0xff]
    %vm348 = vcmask 261120
    %v350 = vsel %vm348, %v340, 0
    %v353 = vsel %vm348, %v341, 0
    %v356 = vsel %vm348, %v342, 0
    %v359 = vsel %vm348, %v343, 0
    %361 = vmatpush.msra.mxu0 0.0
    %362 = vmatpush.msra.mxu0 0.0
    %363 = vmatpush.msra.mxu0 0.0
    %364 = vmatpush.msra.mxu0 0.0
    %365 = vmatpush.msra.mxu0 0.0
    %366 = vmatpush.msra.mxu0 0.0
    %367 = vmatpush.msra.mxu0 0.0
    %368 = vmatpush.msra.mxu0 0.0
    %369 = vmatpush.msra.mxu0 0.0
    %370 = vmatpush.msra.mxu0 0.0
    %371 = vmatpush.msra.mxu0 0.0
    %372 = vmatpush.msra.mxu0 0.0
    %373 = vmatpush.msra.mxu0 %v347
    %374 = vmatpush.msra.mxu0 %v346
    %375 = vmatpush.msra.mxu0 %v345
    %376 = vmatpush.msra.mxu0 %v344
    %377 = vmatmul.f32.gmra.mxu0 %v350
    %v378 = vpop.f32.mrf.mxu0
    %v379 = vadd.f32 0.0, %v378
    %380 = vmatmul.f32.gmra.mxu0 %v353
    %v381 = vpop.f32.mrf.mxu0
    %v382 = vadd.f32 0.0, %v381
    %383 = vmatmul.f32.gmra.mxu0 %v356
    %v384 = vpop.f32.mrf.mxu0
    %v385 = vadd.f32 0.0, %v384
    %386 = vmatmul.f32.gmra.mxu0 %v359
    %v387 = vpop.f32.mrf.mxu0
    %v388 = vadd.f32 0.0, %v387
    %389 = vdwg.mxu0
    %v391 = vsel %vm348, %v332, 0
    %v394 = vsel %vm348, %v333, 0
    %v397 = vsel %vm348, %v334, 0
    %v400 = vsel %vm348, %v335, 0
    %402 = vmatpush.msra.mxu0 0.0
    %403 = vmatpush.msra.mxu0 0.0
    %404 = vmatpush.msra.mxu0 0.0
    %405 = vmatpush.msra.mxu0 0.0
    %406 = vmatpush.msra.mxu0 0.0
    %407 = vmatpush.msra.mxu0 0.0
    %408 = vmatpush.msra.mxu0 0.0
    %409 = vmatpush.msra.mxu0 0.0
    %410 = vmatpush.msra.mxu0 0.0
    %411 = vmatpush.msra.mxu0 0.0
    %412 = vmatpush.msra.mxu0 0.0
    %413 = vmatpush.msra.mxu0 0.0
    %414 = vmatpush.msra.mxu0 %v339
    %415 = vmatpush.msra.mxu0 %v338
    %416 = vmatpush.msra.mxu0 %v337
    %417 = vmatpush.msra.mxu0 %v336
    %418 = vmatmul.f32.gmra.mxu0 %v391
    %v419 = vpop.f32.mrf.mxu0
    %v420 = vadd.f32 %v379, %v419
    %421 = vmatmul.f32.gmra.mxu0 %v394
    %v422 = vpop.f32.mrf.mxu0
    %v423 = vadd.f32 %v382, %v422
    %424 = vmatmul.f32.gmra.mxu0 %v397
    %v425 = vpop.f32.mrf.mxu0
    %v426 = vadd.f32 %v385, %v425
    %427 = vmatmul.f32.gmra.mxu0 %v400
    %v428 = vpop.f32.mrf.mxu0
    %v429 = vadd.f32 %v388, %v428
    %430 = vdwg.mxu0
    %v431 = vld [vmem:[#allocation2 + $0x2] sm:$0xff]
    %v432 = vld [vmem:[#allocation2 + $0xa] sm:$0xff]
    %v433 = vld [vmem:[#allocation2 + $0x12] sm:$0xff]
    %v434 = vld [vmem:[#allocation2 + $0x1a] sm:$0xff]
    %v435 = vld [vmem:[%s2 + $0x40] sm:$0xff]
    %v436 = vld [vmem:[%s2 + $0x48] sm:$0xff]
    %v437 = vld [vmem:[%s2 + $0x50] sm:$0xff]
    %v438 = vld [vmem:[%s2 + $0x58] sm:$0xff]
    %v440 = vsel %vm348, %v431, 0
    %v443 = vsel %vm348, %v432, 0
    %v446 = vsel %vm348, %v433, 0
    %v449 = vsel %vm348, %v434, 0
    %451 = vmatpush.msra.mxu0 0.0
    %452 = vmatpush.msra.mxu0 0.0
    %453 = vmatpush.msra.mxu0 0.0
    %454 = vmatpush.msra.mxu0 0.0
    %455 = vmatpush.msra.mxu0 0.0
    %456 = vmatpush.msra.mxu0 0.0
    %457 = vmatpush.msra.mxu0 0.0
    %458 = vmatpush.msra.mxu0 0.0
    %459 = vmatpush.msra.mxu0 0.0
    %460 = vmatpush.msra.mxu0 0.0
    %461 = vmatpush.msra.mxu0 0.0
    %462 = vmatpush.msra.mxu0 0.0
    %463 = vmatpush.msra.mxu0 %v438
    %464 = vmatpush.msra.mxu0 %v437
    %465 = vmatpush.msra.mxu0 %v436
    %466 = vmatpush.msra.mxu0 %v435
    %467 = vmatmul.f32.gmra.mxu0 %v440
    %v468 = vpop.f32.mrf.mxu0
    %v469 = vadd.f32 0.0, %v468
    %470 = vmatmul.f32.gmra.mxu0 %v443
    %v471 = vpop.f32.mrf.mxu0
    %v472 = vadd.f32 0.0, %v471
    %473 = vmatmul.f32.gmra.mxu0 %v446
    %v474 = vpop.f32.mrf.mxu0
    %v475 = vadd.f32 0.0, %v474
    %476 = vmatmul.f32.gmra.mxu0 %v449
    %v477 = vpop.f32.mrf.mxu0
    %v478 = vadd.f32 0.0, %v477
    %479 = vdwg.mxu0
    %v480 = vadd.f32 %v420, %v469
    %v481 = vadd.f32 %v423, %v472
    %v482 = vadd.f32 %v426, %v475
    %v483 = vadd.f32 %v429, %v478
    %v484 = vld [vmem:[#allocation2 + $0x3] sm:$0xff]
    %v485 = vld [vmem:[#allocation2 + $0xb] sm:$0xff]
    %v486 = vld [vmem:[#allocation2 + $0x13] sm:$0xff]
    %v487 = vld [vmem:[#allocation2 + $0x1b] sm:$0xff]
    %v488 = vld [vmem:[%s2 + $0x60] sm:$0xff]
    %v489 = vld [vmem:[%s2 + $0x68] sm:$0xff]
    %v490 = vld [vmem:[%s2 + $0x70] sm:$0xff]
    %v491 = vld [vmem:[%s2 + $0x78] sm:$0xff]
    %v493 = vsel %vm348, %v484, 0
    %v496 = vsel %vm348, %v485, 0
    %v499 = vsel %vm348, %v486, 0
    %v502 = vsel %vm348, %v487, 0
    %504 = vmatpush.msra.mxu0 0.0
    %505 = vmatpush.msra.mxu0 0.0
    %506 = vmatpush.msra.mxu0 0.0
    %507 = vmatpush.msra.mxu0 0.0
    %508 = vmatpush.msra.mxu0 0.0
    %509 = vmatpush.msra.mxu0 0.0
    %510 = vmatpush.msra.mxu0 0.0
    %511 = vmatpush.msra.mxu0 0.0
    %512 = vmatpush.msra.mxu0 0.0
    %513 = vmatpush.msra.mxu0 0.0
    %514 = vmatpush.msra.mxu0 0.0
    %515 = vmatpush.msra.mxu0 0.0
    %516 = vmatpush.msra.mxu0 %v491
    %517 = vmatpush.msra.mxu0 %v490
    %518 = vmatpush.msra.mxu0 %v489
    %519 = vmatpush.msra.mxu0 %v488
    %520 = vmatmul.f32.gmra.mxu0 %v493
    %v521 = vpop.f32.mrf.mxu0
    %v522 = vadd.f32 0.0, %v521
    %523 = vmatmul.f32.gmra.mxu0 %v496
    %v524 = vpop.f32.mrf.mxu0
    %v525 = vadd.f32 0.0, %v524
    %526 = vmatmul.f32.gmra.mxu0 %v499
    %v527 = vpop.f32.mrf.mxu0
    %v528 = vadd.f32 0.0, %v527
    %529 = vmatmul.f32.gmra.mxu0 %v502
    %v530 = vpop.f32.mrf.mxu0
    %v531 = vadd.f32 0.0, %v530
    %532 = vdwg.mxu0
    %v533 = vadd.f32 %v480, %v522
    %v534 = vadd.f32 %v481, %v525
    %v535 = vadd.f32 %v482, %v528
    %v536 = vadd.f32 %v483, %v531
    %v537 = vld [vmem:[#allocation2 + $0x4] sm:$0xff]
    %v538 = vld [vmem:[#allocation2 + $0xc] sm:$0xff]
    %v539 = vld [vmem:[#allocation2 + $0x14] sm:$0xff]
    %v540 = vld [vmem:[#allocation2 + $0x1c] sm:$0xff]
    %v541 = vld [vmem:[%s2 + $0x80] sm:$0xff]
    %v542 = vld [vmem:[%s2 + $0x88] sm:$0xff]
    %v543 = vld [vmem:[%s2 + $0x90] sm:$0xff]
    %v544 = vld [vmem:[%s2 + $0x98] sm:$0xff]
    %v546 = vsel %vm348, %v537, 0
    %v549 = vsel %vm348, %v538, 0
    %v552 = vsel %vm348, %v539, 0
    %v555 = vsel %vm348, %v540, 0
    %557 = vmatpush.msra.mxu0 0.0
    %558 = vmatpush.msra.mxu0 0.0
    %559 = vmatpush.msra.mxu0 0.0
    %560 = vmatpush.msra.mxu0 0.0
    %561 = vmatpush.msra.mxu0 0.0
    %562 = vmatpush.msra.mxu0 0.0
    %563 = vmatpush.msra.mxu0 0.0
    %564 = vmatpush.msra.mxu0 0.0
    %565 = vmatpush.msra.mxu0 0.0
    %566 = vmatpush.msra.mxu0 0.0
    %567 = vmatpush.msra.mxu0 0.0
    %568 = vmatpush.msra.mxu0 0.0
    %569 = vmatpush.msra.mxu0 %v544
    %570 = vmatpush.msra.mxu0 %v543
    %571 = vmatpush.msra.mxu0 %v542
    %572 = vmatpush.msra.mxu0 %v541
    %573 = vmatmul.f32.gmra.mxu0 %v546
    %v574 = vpop.f32.mrf.mxu0
    %v575 = vadd.f32 0.0, %v574
    %576 = vmatmul.f32.gmra.mxu0 %v549
    %v577 = vpop.f32.mrf.mxu0
    %v578 = vadd.f32 0.0, %v577
    %579 = vmatmul.f32.gmra.mxu0 %v552
    %v580 = vpop.f32.mrf.mxu0
    %v581 = vadd.f32 0.0, %v580
    %582 = vmatmul.f32.gmra.mxu0 %v555
    %v583 = vpop.f32.mrf.mxu0
    %v584 = vadd.f32 0.0, %v583
    %585 = vdwg.mxu0
    %v586 = vadd.f32 %v533, %v575
    %v587 = vadd.f32 %v534, %v578
    %v588 = vadd.f32 %v535, %v581
    %v589 = vadd.f32 %v536, %v584
    %v590 = vlaneseq
    %v591 = vshrl.u32 %v590, 7
    %v592 = vadd.s32 %v591, 8
    %v593 = vadd.s32 %v591, 16
    %v594 = vadd.s32 %v591, 24
    %vm595 = vcmp.lt.s32.totalorder %v591, 0
    %v596 = vsub.s32 0, %v591
    %v597 = vsel %vm595, %v596, %v591
    %v598 = vshrl.u32 %v597, 4
    %v599 = vand.u32 %v597, 15
    %v600 = vsub.s32 0, %v599
    %v601 = vsel %vm595, %v600, %v599
    %vm602 = vcmp.lt.s32.totalorder %v592, 0
    %v603 = vsub.s32 0, %v592
    %v604 = vsel %vm602, %v603, %v592
    %v605 = vshrl.u32 %v604, 4
    %v606 = vand.u32 %v604, 15
    %v607 = vsub.s32 0, %v606
    %v608 = vsel %vm602, %v607, %v606
    %vm609 = vcmp.lt.s32.totalorder %v593, 0
    %v610 = vsub.s32 0, %v593
    %v611 = vsel %vm609, %v610, %v593
    %v612 = vshrl.u32 %v611, 4
    %v613 = vand.u32 %v611, 15
    %v614 = vsub.s32 0, %v613
    %v615 = vsel %vm609, %v614, %v613
    %vm616 = vcmp.lt.s32.totalorder %v594, 0
    %v617 = vsub.s32 0, %v594
    %v618 = vsel %vm616, %v617, %v594
    %v619 = vshrl.u32 %v618, 4
    %v620 = vand.u32 %v618, 15
    %v621 = vsub.s32 0, %v620
    %v622 = vsel %vm616, %v621, %v620
    %vm623 = vcmp.ne.s32.totalorder %v601, 0
    %vm624 = vcmp.ne.s32.totalorder %v608, 0
    %vm625 = vcmp.ne.s32.totalorder %v615, 0
    %vm626 = vcmp.ne.s32.totalorder %v622, 0
    %vm627 = vcmp.lt.s32.totalorder %v601, 0
    %vm628 = vcmp.lt.s32.totalorder %v608, 0
    %vm629 = vcmp.lt.s32.totalorder %v615, 0
    %vm630 = vcmp.lt.s32.totalorder %v622, 0
    %vm631 = vmand %vm627, %vm623
    %vm632 = vmand %vm628, %vm624
    %vm633 = vmand %vm629, %vm625
    %vm634 = vmand %vm630, %vm626
    %v635 = vadd.s32 %v601, 16
    %v636 = vadd.s32 %v608, 16
    %v637 = vadd.s32 %v615, 16
    %v638 = vadd.s32 %v622, 16
    %v639 = vsel %vm631, %v635, %v601
    %v640 = vsel %vm632, %v636, %v608
    %v641 = vsel %vm633, %v637, %v615
    %v642 = vsel %vm634, %v638, %v622
    %v643 = vld [vmem:[%s8] sm:$0x1]
    %v644 = vperm.slane %v643, 0
    %vm645 = vcmp.lt.s32.totalorder %v639, %v644
    %vm646 = vcmp.lt.s32.totalorder %v640, %v644
    %vm647 = vcmp.lt.s32.totalorder %v641, %v644
    %vm648 = vcmp.lt.s32.totalorder %v642, %v644
    %v649 = vsel %vm645, %v586, -inf
    %v650 = vsel %vm646, %v587, -inf
    %v651 = vsel %vm647, %v588, -inf
    %v652 = vsel %vm648, %v589, -inf
    %vm653 = vcmask 195584
    %v654 = vsel %vm653, %v649, -inf
    %v655 = vsel %vm653, %v650, -inf
    %v656 = vmax.f32 %v654, %v655
    %v657 = vrot.slane %v656, 4
    %v658 = vmax.f32 %v656, %v657
    %v659 = vrot.slane %v658, 2
    %v660 = vmax.f32 %v658, %v659
    %v661 = vrot.slane %v660, 1
    %v662 = vmax.f32 %v660, %v661
    %v663 = vsel %vm653, %v651, -inf
    %v664 = vsel %vm653, %v652, -inf
    %v665 = vmax.f32 %v663, %v664
    %v666 = vrot.slane %v665, 4
    %v667 = vmax.f32 %v665, %v666
    %v668 = vrot.slane %v667, 2
    %v669 = vmax.f32 %v667, %v668
    %v670 = vrot.slane %v669, 1
    %v671 = vmax.f32 %v669, %v670
    %vm672 = vcmask 1040384
    %v673 = vsel %vm672, %v662, %v671
    %v674 = vld [vmem:[%s5] sm:$0x1]
    %v676 = vperm.slane %v674, 0
    %v678 = vadd.f32 %v673, %v676
    %v679 = vmax.f32 %v678, 0.0
    %v680 = vld [vmem:[%s3] sm:$0xff]
    %v681 = vld [vmem:[%s3 + $0x8] sm:$0xff]
    %v682 = vld [vmem:[%s3 + $0x10] sm:$0xff]
    %v683 = vld [vmem:[%s6] sm:$0x1]
    %v685 = vperm.slane %v683, 0
    %v688 = vsel %vm653, %v679, 0
    %690 = vmatpush.msra.mxu0 0.0
    %691 = vmatpush.msra.mxu0 0.0
    %692 = vmatpush.msra.mxu0 0.0
    %693 = vmatpush.msra.mxu0 0.0
    %694 = vmatpush.msra.mxu0 0.0
    %695 = vmatpush.msra.mxu0 0.0
    %696 = vmatpush.msra.mxu0 0.0
    %697 = vmatpush.msra.mxu0 0.0
    %698 = vmatpush.msra.mxu0 0.0
    %699 = vmatpush.msra.mxu0 0.0
    %700 = vmatpush.msra.mxu0 0.0
    %701 = vmatpush.msra.mxu0 0.0
    %702 = vmatpush.msra.mxu0 0.0
    %703 = vmatpush.msra.mxu0 %v682
    %704 = vmatpush.msra.mxu0 %v681
    %705 = vmatpush.msra.mxu0 %v680
    %706 = vmatmul.f32.gmra.mxu0 %v688
    %v707 = vpop.f32.mrf.mxu0
    %v708 = vadd.f32 %v685, %v707
    %709 = vdwg.mxu0
    %v710 = vmax.f32 %v708, 0.0
    %v711 = vld [vmem:[%s4] sm:$0xff]
    %v712 = vld [vmem:[%s4 + $0x8] sm:$0xff]
    %v713 = vld [vmem:[%s4 + $0x10] sm:$0xff]
    %v714 = vld [vmem:[%s4 + $0x18] sm:$0xff]
    %v715 = vld [vmem:[%s7] sm:$0x1]
    %v717 = vperm.slane %v715, 0
    %v720 = vsel %vm348, %v710, 0
    %722 = vmatpush.msra.mxu0 0.0
    %723 = vmatpush.msra.mxu0 0.0
    %724 = vmatpush.msra.mxu0 0.0
    %725 = vmatpush.msra.mxu0 0.0
    %726 = vmatpush.msra.mxu0 0.0
    %727 = vmatpush.msra.mxu0 0.0
    %728 = vmatpush.msra.mxu0 0.0
    %729 = vmatpush.msra.mxu0 0.0
    %730 = vmatpush.msra.mxu0 0.0
    %731 = vmatpush.msra.mxu0 0.0
    %732 = vmatpush.msra.mxu0 0.0
    %733 = vmatpush.msra.mxu0 0.0
    %734 = vmatpush.msra.mxu0 %v714
    %735 = vmatpush.msra.mxu0 %v713
    %736 = vmatpush.msra.mxu0 %v712
    %737 = vmatpush.msra.mxu0 %v711
    %738 = vmatmul.f32.gmra.mxu0 %v720
    %v739 = vpop.f32.mrf.mxu0
    %v740 = vadd.f32 %v717, %v739
    %741 = vdwg.mxu0
    %v742 = vxor.u32 %v740, 2147483648
    %v743 = vmul.f32 %v742, 1.442695
    %v744 = vpow.pop %v743
    %v745 = vadd.f32 %v744, 1.0
    %v746 = vrcp.pop %v745
    %v747 = vmul.f32 %v745, %v746
    %v748 = vsub.f32 1.0, %v747
    %v749 = vmul.f32 %v746, %v748
    %v750 = vadd.f32 %v746, %v749
    %vm751 = vweird.f32 %v745
    %vm752 = vweird.f32 %v746
    %vm753 = vmor %vm751, %vm752
    %v754 = vsel %vm753, %v746, %v750
    %v755 = vand.u32 2147483647, %v745
    %vm756 = vcmp.eq.f32.partialorder %v755, 8.507059e+37
    %v757 = vand.u32 %v745, 2147483648
    %v758 = vor.u32 1.1754944e-38, %v757
    %v759 = vsel %vm756, %v758, %v754
    %v760 = vmul.f32 1.0, %v759
    %vm761 = vcmask 25600
    %762 = vst.msk [vmem:[#allocation5] sm:$0x3] %vm761, %v760
    // Predicated region
    $region34: #{tpu_custom_call.1} parent=1 // pred_check
      _
    $region35: #{tpu_custom_call.1} parent=1 // pred_check_branch
      %764 = sbr.rel (0) target = $region37
    $region36: #{tpu_custom_call.1} parent=1 // pred_region
      %766 = vsyncadd [#allocation6], 0
      %s768 = sshll.u32 [#allocation5], 4
      %s769 = int_to_ptr.vmem [resolvable:$true] %s768
      %s770 = sshll.u32 %s9, 4
      %s771 = int_to_ptr.hbm [resolvable:$true] %s770
      %773 = dma.vmem_to_hbm [thread:$0]  %s769, 32, %s771, [#allocation6]
    $region37: #{tpu_custom_call.1} parent=1 // pred_fallthru
      _
    // Predicated region
    $region38: #{tpu_custom_call.1} parent=1 // pred_check
      _
    $region39: #{tpu_custom_call.1} parent=1 // pred_check_branch
      %775 = sbr.rel (0) target = $region41
    $region40: #{tpu_custom_call.1} parent=1 // pred_region
      %777 = dma.done [#allocation6], 32
    $region41: #{tpu_custom_call.1} parent=1 // pred_fallthru
      _
    %778 = vsyncpa [#allocation6], 1

</llo_original>
